<compile_context>
chip_gen: v7x
topology: tpu7x:2x2x1
jax: 0.10.0
libtpu: 0.0.40
codegen_flags: <defaults>
</compile_context>

<pallas_src>
import numpy as np
import jax
import jax.numpy as jnp
from jax.experimental import pallas as pl
from jax.experimental.pallas import tpu as pltpu


def _make_ncf_kernel(n_layers, embed_dim, user_field_idx, item_field_idx):
    u0 = int(user_field_idx) * embed_dim
    i0 = int(item_field_idx) * embed_dim

    def kernel(emb_ref, *rest):
        # rest = [W0, b0, W1, b1, ..., wg, wm, fcb, o_ref]
        layer_refs = rest[: 2 * n_layers]
        wg_ref, wm_ref, fcb_ref, o_ref = rest[2 * n_layers:]

        emb = emb_ref[...]                                    # (Bt, F*E) bf16

        # GMF term: slice user/item fields from the single embedding stream.
        # Elementwise math in f32 (v5e VPU has no bf16 support).
        user = emb[:, u0:u0 + embed_dim].astype(jnp.float32)  # (Bt, E)
        item = emb[:, i0:i0 + embed_dim].astype(jnp.float32)  # (Bt, E)
        gmf = user * item                                     # (Bt, E) f32

        # MLP: bf16 MXU operands, f32 accumulation.  BN already folded into
        # W/b in the wrapper; dropout is identity at inference.
        h = emb
        for l in range(n_layers):
            w = layer_refs[2 * l][...]                        # (d_in, d_out) bf16
            b = layer_refs[2 * l + 1][...]                    # (1, d_out)    f32
            acc = jnp.dot(h, w, preferred_element_type=jnp.float32) + b
            acc = jnp.maximum(acc, 0.0)
            h = acc.astype(jnp.bfloat16) if l + 1 < n_layers else acc

        # Final fc on cat([gmf, h]): two f32 lane reductions (VPU/XLU) instead
        # of degenerate N=1 MXU matmuls.
        out = (jnp.sum(gmf * wg_ref[...], axis=1, keepdims=True)
               + jnp.sum(h * wm_ref[...], axis=1, keepdims=True)
               + fcb_ref[...])
        o_ref[...] = out                                      # (Bt, 1) f32

    return kernel


def ncf_forward(x, offsets, emb_table, mlp_params, bn_params, fc_w, fc_b,
                user_field_idx, item_field_idx, *, block_b=512):
    """x: (B, F) int32 per-field indices.  Returns (B,) float32."""
    B, F = x.shape
    V, E = emb_table.shape

    # Embedding gather in the wrapper, in bf16 (halves the gathered-activation
    # HBM traffic).  See TODO(synk) above re: fully fused in-kernel gather.
    idx = (x + offsets[None, :]).astype(jnp.int32)
    emb_flat = jnp.take(emb_table.astype(jnp.bfloat16), idx, axis=0) \
                  .reshape(B, F * E)                           # (B, F*E) bf16

    # Fold eval-mode BatchNorm into the Linear layers:
    #   s = gamma / sqrt(var+eps), t = beta - mean*s  =>  W_eff = W*s, b_eff = b*s + t
    # Weights -> bf16 (MXU operands); biases stay f32.
    folded = []
    for (W, b), (gamma, beta, mean, var, eps) in zip(mlp_params, bn_params):
        s = gamma / jnp.sqrt(var + eps)
        W_eff = (W * s[None, :]).astype(jnp.bfloat16)
        b_eff = (b * s + (beta - mean * s)).reshape(1, -1).astype(jnp.float32)
        folded += [W_eff, b_eff]
    n_layers = len(mlp_params)
    d_last = mlp_params[-1][0].shape[1]

    # Split final fc weight: first E columns act on gmf, rest on the MLP output.
    wg = fc_w[:, :E].reshape(1, E).astype(jnp.float32)
    wm = fc_w[:, E:].reshape(1, d_last).astype(jnp.float32)
    fcb = fc_b.reshape(1, 1).astype(jnp.float32)

    # Batch tile: as large as possible (per-step overhead ~0.35us), but keep
    # the grid >= 2 so the "parallel" batch axis can shard across v7x's 2 TCs.
    Bt = min(block_b, B)
    assert B % Bt == 0, "batch must be divisible by the batch tile"
    if B // Bt < 2 and B >= 16 and (B // 2) % 8 == 0:
        Bt = B // 2

    in_specs = [pl.BlockSpec((Bt, F * E), lambda i: (i, 0))]
    for l in range(n_layers):
        in_specs.append(pl.BlockSpec(folded[2 * l].shape, lambda i: (0, 0)))
        in_specs.append(pl.BlockSpec(folded[2 * l + 1].shape, lambda i: (0, 0)))
    in_specs += [
        pl.BlockSpec((1, E), lambda i: (0, 0)),
        pl.BlockSpec((1, d_last), lambda i: (0, 0)),
        pl.BlockSpec((1, 1), lambda i: (0, 0)),
    ]

    out = pl.pallas_call(
        _make_ncf_kernel(n_layers, E, user_field_idx, item_field_idx),
        out_shape=jax.ShapeDtypeStruct((B, 1), jnp.float32),
        grid=(B // Bt,),
        in_specs=in_specs,
        out_specs=pl.BlockSpec((Bt, 1), lambda i: (i, 0)),
        compiler_params=pltpu.CompilerParams(
            dimension_semantics=("parallel",),
            vmem_limit_bytes=32 * 1024 * 1024),
    )(emb_flat, *folded, wg, wm, fcb)
    return out[:, 0]


def ncf_ref(x, offsets, emb_table, mlp_params, bn_params, fc_w, fc_b,
            user_field_idx, item_field_idx):
    """Pure-JAX f32 reference mirroring the PyTorch forward (eval mode)."""
    B, F = x.shape
    idx = x + offsets[None, :]
    emb = emb_table[idx]                                      # (B, F, E)
    user_x = emb[:, user_field_idx]
    item_x = emb[:, item_field_idx]
    gmf = user_x * item_x
    h = emb.reshape(B, -1)
    for (W, b), (gamma, beta, mean, var, eps) in zip(mlp_params, bn_params):
        h = jnp.dot(h, W, precision=jax.lax.Precision.HIGHEST) + b
        h = gamma * (h - mean) / jnp.sqrt(var + eps) + beta
        h = jnp.maximum(h, 0.0)
        # dropout: identity in eval mode
    z = jnp.concatenate([gmf, h], axis=1)
    return jnp.sum(z * fc_w[0][None, :], axis=1) + fc_b[0]


if __name__ == "__main__":
    # Small deterministic config consistent with the module's forward.
    field_dims = np.array([97, 131], dtype=np.int64)          # [n_users, n_items]
    F = len(field_dims)
    V = int(field_dims.sum())
    E = 16                                                     # embed_dim
    mlp_dims = (64, 32)
    B = 1024                                                   # 2 tiles of 512
    user_field_idx, item_field_idx = 0, 1
    eps = 1e-5

    offsets = jnp.asarray(
        np.array((0, *np.cumsum(field_dims)[:-1]), dtype=np.int32))

    key = jax.random.PRNGKey(0)
    keys = jax.random.split(key, 16)

    # Inputs: per-field categorical indices.
    x_cols = [jax.random.randint(keys[f], (B,), 0, int(field_dims[f]),
                                 dtype=jnp.int32) for f in range(F)]
    x = jnp.stack(x_cols, axis=1)                              # (B, F) int32

    # Embedding table (xavier_uniform as in the torch module).
    xav = float(np.sqrt(6.0 / (V + E)))
    emb_table = jax.random.uniform(keys[2], (V, E), jnp.float32,
                                   minval=-xav, maxval=xav)

    # MLP Linear (stored as (in, out)) + BatchNorm1d (eval-mode) parameters.
    mlp_params, bn_params = [], []
    d_in = F * E
    kidx = 3
    for d_out in mlp_dims:
        kW, kb, kg, kbe, km, kv = jax.random.split(keys[kidx], 6)
        kidx += 1
        W = jax.random.normal(kW, (d_in, d_out), jnp.float32) / np.sqrt(d_in)
        b = jax.random.normal(kb, (d_out,), jnp.float32) * 0.01
        gamma = jax.random.uniform(kg, (d_out,), jnp.float32, 0.5, 1.5)
        beta = jax.random.normal(kbe, (d_out,), jnp.float32) * 0.1
        mean = jax.random.normal(km, (d_out,), jnp.float32) * 0.1
        var = jax.random.uniform(kv, (d_out,), jnp.float32, 0.5, 1.5)
        mlp_params.append((W, b))
        bn_params.append((gamma, beta, mean, var, eps))
        d_in = d_out

    kf1, kf2 = jax.random.split(keys[kidx], 2)
    fc_w = jax.random.normal(kf1, (1, E + mlp_dims[-1]), jnp.float32) \
        / np.sqrt(E + mlp_dims[-1])
    fc_b = jax.random.normal(kf2, (1,), jnp.float32) * 0.01

    out = jax.block_until_ready(
        ncf_forward(x, offsets, emb_table, mlp_params, bn_params, fc_w, fc_b,
                    user_field_idx, item_field_idx, block_b=512))
    ref = jax.block_until_ready(
        ncf_ref(x, offsets, emb_table, mlp_params, bn_params, fc_w, fc_b,
                user_field_idx, item_field_idx))

    assert out.shape == (B,)
    # bf16 matmul operands vs. f32 HIGHEST reference -> loosened tolerance.
    np.testing.assert_allclose(np.asarray(out), np.asarray(ref),
                               rtol=2e-2, atol=2e-2)
    print("KERNEL_OK")
</pallas_src>

<mosaic_0001>
module attributes {stable_mosaic.version = 11 : i64} {
  func.func @kernel(%arg0: i32, %arg1: memref<512x32xbf16, #tpu.memory_space<vmem>>, %arg2: memref<32x64xbf16, #tpu.memory_space<vmem>>, %arg3: memref<1x64xf32, #tpu.memory_space<vmem>>, %arg4: memref<64x32xbf16, #tpu.memory_space<vmem>>, %arg5: memref<1x32xf32, #tpu.memory_space<vmem>>, %arg6: memref<1x16xf32, #tpu.memory_space<vmem>>, %arg7: memref<1x32xf32, #tpu.memory_space<vmem>>, %arg8: memref<1x1xf32, #tpu.memory_space<vmem>>, %arg9: memref<512x1xf32, #tpu.memory_space<vmem>>) attributes {dimension_semantics = [#tpu.dimension_semantics<parallel>], iteration_bounds = array<i64: 2>, scalar_prefetch = 0 : i64, scratch_operands = 0 : i64, tpu.core_type = #tpu.core_type<tc>, window_params = [{transform_indices = @transform_0, window_bounds = array<i64: 512, 32>}, {pipeline_mode = #tpu.pipeline_mode<synchronous>, transform_indices = @transform_1, window_bounds = array<i64: 32, 64>}, {pipeline_mode = #tpu.pipeline_mode<synchronous>, transform_indices = @transform_2, window_bounds = array<i64: 1, 64>}, {pipeline_mode = #tpu.pipeline_mode<synchronous>, transform_indices = @transform_3, window_bounds = array<i64: 64, 32>}, {pipeline_mode = #tpu.pipeline_mode<synchronous>, transform_indices = @transform_4, window_bounds = array<i64: 1, 32>}, {pipeline_mode = #tpu.pipeline_mode<synchronous>, transform_indices = @transform_5, window_bounds = array<i64: 1, 16>}, {pipeline_mode = #tpu.pipeline_mode<synchronous>, transform_indices = @transform_6, window_bounds = array<i64: 1, 32>}, {pipeline_mode = #tpu.pipeline_mode<synchronous>, transform_indices = @transform_7, window_bounds = array<i64: 1, 1>}, {transform_indices = @transform_8, window_bounds = array<i64: 512, 1>}]} {
    %c0 = arith.constant 0 : index
    %c0_0 = arith.constant 0 : index
    %0 = vector.load %arg1[%c0, %c0_0] : memref<512x32xbf16, #tpu.memory_space<vmem>>, vector<512x32xbf16>
    %1 = vector.extract_strided_slice %0 {offsets = [0, 0], sizes = [512, 16], strides = [1, 1]} : vector<512x32xbf16> to vector<512x16xbf16>
    %2 = arith.extf %1 : vector<512x16xbf16> to vector<512x16xf32>
    %3 = vector.extract_strided_slice %0 {offsets = [0, 16], sizes = [512, 16], strides = [1, 1]} : vector<512x32xbf16> to vector<512x16xbf16>
    %4 = arith.extf %3 : vector<512x16xbf16> to vector<512x16xf32>
    %5 = arith.mulf %2, %4 : vector<512x16xf32>
    %c0_1 = arith.constant 0 : index
    %c0_2 = arith.constant 0 : index
    %6 = vector.load %arg2[%c0_1, %c0_2] : memref<32x64xbf16, #tpu.memory_space<vmem>>, vector<32x64xbf16>
    %c0_3 = arith.constant 0 : index
    %c0_4 = arith.constant 0 : index
    %7 = vector.load %arg3[%c0_3, %c0_4] : memref<1x64xf32, #tpu.memory_space<vmem>>, vector<1x64xf32>
    %cst = arith.constant dense<0.000000e+00> : vector<512x64xf32>
    %8 = tpu.matmul %0, %6, %cst {dimension_numbers = #tpu.dot_dimension_numbers<[1], [0], [0], [1], [0, 0, 1, 1], [], []>} : vector<512x32xbf16>, vector<32x64xbf16>, vector<512x64xf32> -> vector<512x64xf32>
    %9 = vector.broadcast %7 : vector<1x64xf32> to vector<512x64xf32>
    %10 = arith.addf %8, %9 : vector<512x64xf32>
    %cst_5 = arith.constant 0.000000e+00 : f32
    %11 = vector.broadcast %cst_5 : f32 to vector<512x64xf32>
    %12 = arith.maximumf %10, %11 : vector<512x64xf32>
    %13 = arith.truncf %12 : vector<512x64xf32> to vector<512x64xbf16>
    %c0_6 = arith.constant 0 : index
    %c0_7 = arith.constant 0 : index
    %14 = vector.load %arg4[%c0_6, %c0_7] : memref<64x32xbf16, #tpu.memory_space<vmem>>, vector<64x32xbf16>
    %c0_8 = arith.constant 0 : index
    %c0_9 = arith.constant 0 : index
    %15 = vector.load %arg5[%c0_8, %c0_9] : memref<1x32xf32, #tpu.memory_space<vmem>>, vector<1x32xf32>
    %cst_10 = arith.constant dense<0.000000e+00> : vector<512x32xf32>
    %16 = tpu.matmul %13, %14, %cst_10 {dimension_numbers = #tpu.dot_dimension_numbers<[1], [0], [0], [1], [0, 0, 1, 1], [], []>} : vector<512x64xbf16>, vector<64x32xbf16>, vector<512x32xf32> -> vector<512x32xf32>
    %17 = vector.broadcast %15 : vector<1x32xf32> to vector<512x32xf32>
    %18 = arith.addf %16, %17 : vector<512x32xf32>
    %cst_11 = arith.constant 0.000000e+00 : f32
    %19 = vector.broadcast %cst_11 : f32 to vector<512x32xf32>
    %20 = arith.maximumf %18, %19 : vector<512x32xf32>
    %c0_12 = arith.constant 0 : index
    %c0_13 = arith.constant 0 : index
    %21 = vector.load %arg6[%c0_12, %c0_13] : memref<1x16xf32, #tpu.memory_space<vmem>>, vector<1x16xf32>
    %22 = vector.broadcast %21 : vector<1x16xf32> to vector<512x16xf32>
    %23 = arith.mulf %5, %22 : vector<512x16xf32>
    %cst_14 = arith.constant dense<0.000000e+00> : vector<512xf32>
    %24 = vector.multi_reduction <add>, %23, %cst_14 [1] : vector<512x16xf32> to vector<512xf32>
    %25 = vector.shape_cast %24 : vector<512xf32> to vector<512x1xf32>
    %c0_15 = arith.constant 0 : index
    %c0_16 = arith.constant 0 : index
    %26 = vector.load %arg7[%c0_15, %c0_16] : memref<1x32xf32, #tpu.memory_space<vmem>>, vector<1x32xf32>
    %27 = vector.broadcast %26 : vector<1x32xf32> to vector<512x32xf32>
    %28 = arith.mulf %20, %27 : vector<512x32xf32>
    %cst_17 = arith.constant dense<0.000000e+00> : vector<512xf32>
    %29 = vector.multi_reduction <add>, %28, %cst_17 [1] : vector<512x32xf32> to vector<512xf32>
    %30 = vector.shape_cast %29 : vector<512xf32> to vector<512x1xf32>
    %31 = arith.addf %25, %30 : vector<512x1xf32>
    %c0_18 = arith.constant 0 : index
    %c0_19 = arith.constant 0 : index
    %32 = vector.load %arg8[%c0_18, %c0_19] : memref<1x1xf32, #tpu.memory_space<vmem>>, vector<1x1xf32>
    %33 = vector.broadcast %32 : vector<1x1xf32> to vector<512x1xf32>
    %34 = arith.addf %31, %33 : vector<512x1xf32>
    %c0_20 = arith.constant 0 : index
    %c0_21 = arith.constant 0 : index
    %35 = vector.load %arg9[%c0_20, %c0_21] : memref<512x1xf32, #tpu.memory_space<vmem>>, vector<512x1xf32>
    tpu.vector_store %arg9[%c0_20, %c0_21], %34 {strides = array<i32>} : memref<512x1xf32, #tpu.memory_space<vmem>>, vector<512x1xf32>,
    return
  }
  func.func @transform_0(%arg0: i32) -> (i32, i32) {
    %c0_i32 = arith.constant 0 : i32
    %c0_i32_0 = arith.constant 0 : i32
    return %arg0, %c0_i32 : i32, i32
  }
  func.func @transform_1(%arg0: i32) -> (i32, i32) {
    %c0_i32 = arith.constant 0 : i32
    %c0_i32_0 = arith.constant 0 : i32
    %c0_i32_1 = arith.constant 0 : i32
    return %c0_i32, %c0_i32_0 : i32, i32
  }
  func.func @transform_2(%arg0: i32) -> (i32, i32) {
    %c0_i32 = arith.constant 0 : i32
    %c0_i32_0 = arith.constant 0 : i32
    %c0_i32_1 = arith.constant 0 : i32
    return %c0_i32, %c0_i32_0 : i32, i32
  }
  func.func @transform_3(%arg0: i32) -> (i32, i32) {
    %c0_i32 = arith.constant 0 : i32
    %c0_i32_0 = arith.constant 0 : i32
    %c0_i32_1 = arith.constant 0 : i32
    return %c0_i32, %c0_i32_0 : i32, i32
  }
  func.func @transform_4(%arg0: i32) -> (i32, i32) {
    %c0_i32 = arith.constant 0 : i32
    %c0_i32_0 = arith.constant 0 : i32
    %c0_i32_1 = arith.constant 0 : i32
    return %c0_i32, %c0_i32_0 : i32, i32
  }
  func.func @transform_5(%arg0: i32) -> (i32, i32) {
    %c0_i32 = arith.constant 0 : i32
    %c0_i32_0 = arith.constant 0 : i32
    %c0_i32_1 = arith.constant 0 : i32
    return %c0_i32, %c0_i32_0 : i32, i32
  }
  func.func @transform_6(%arg0: i32) -> (i32, i32) {
    %c0_i32 = arith.constant 0 : i32
    %c0_i32_0 = arith.constant 0 : i32
    %c0_i32_1 = arith.constant 0 : i32
    return %c0_i32, %c0_i32_0 : i32, i32
  }
  func.func @transform_7(%arg0: i32) -> (i32, i32) {
    %c0_i32 = arith.constant 0 : i32
    %c0_i32_0 = arith.constant 0 : i32
    %c0_i32_1 = arith.constant 0 : i32
    return %c0_i32, %c0_i32_0 : i32, i32
  }
  func.func @transform_8(%arg0: i32) -> (i32, i32) {
    %c0_i32 = arith.constant 0 : i32
    %c0_i32_0 = arith.constant 0 : i32
    return %arg0, %c0_i32 : i32, i32
  }
}

</mosaic_0001>

<llo_original>
// kernel: tpu_custom_call.1
$region0: #{tpu_custom_call.1}
  #allocation0 [shape = 'u32[]', space=smem, size = 0x4, offset = 0x4, fixed_abs, tag = 'smem constant byte address 0x4 - core index']
  #allocation1 [shape = 'u32[144,128]{1,0:T(1,128)}', space=vmem, size = 0x12000, scoped, tag = 'internal scratch']
  #allocation2 [shape = 'f32[1,1]{1,0:T(1,128)S(1)}', space=vmem, size = 0x200, scoped, tag = 'scoped memory for tpu_custom_call.1']
  %s0 = inlined_call_operand.vmem [shape: bf16[1024,32], index: 0, kind: input, shape index: {}]
  %s1 = inlined_call_operand.vmem [shape: bf16[32,64], index: 1, kind: input, shape index: {}]
  %s2 = inlined_call_operand.vmem [shape: f32[1,64], index: 2, kind: input, shape index: {}]
  %s3 = inlined_call_operand.vmem [shape: bf16[64,32], index: 3, kind: input, shape index: {}]
  %s4 = inlined_call_operand.vmem [shape: f32[1,32], index: 4, kind: input, shape index: {}]
  %s5 = inlined_call_operand.vmem [shape: f32[1,16], index: 5, kind: input, shape index: {}]
  %s6 = inlined_call_operand.vmem [shape: f32[1,32], index: 6, kind: input, shape index: {}]
  %s7 = inlined_call_operand.<no memory space> [shape: f32[1,1], index: 7, kind: input, shape index: {}]
  %s8 = inlined_call_operand.vmem [shape: f32[1024,1], index: 8, kind: output, shape index: {}]
  %s9 = sld [smem:[#allocation0]]
  $region65: #{tpu_custom_call.1} parent=0
    _
  %s11 = ssub.s32 1, %s9
  %s12 = scalar_select 0, %s11, %s9
  %v13 = vstv %s7
  %14 = vst [vmem:[#allocation2] sm:$0x1] %v13
  loop: start=0, step=1, limit=4
  $region2: #{tpu_custom_call.1} parent=0 // loop_pre_header
    _
  $region3: #{tpu_custom_call.1} parent=0 // loop_header
    %s16 = sphi 0, %s20
    %p17 = scmp.ge.s32.totalorder %s16, 4
    %s26 = sphi 0, %s28
    %s29 = sphi 0, %s26
    %s30 = sphi 0, %s29
    %s46 = sphi 0, %s30
    %s50 = sphi 0, %s50
    %s52 = sphi 0, %s50
    %s53 = sphi 0, %s52
    %s67 = sphi 0, %s53
    %s71 = sphi 0, %s71
    %s73 = sphi 0, %s71
    %s74 = sphi 0, %s73
    %s88 = sphi 0, %s74
    %s92 = sphi 0, %s92
    %s94 = sphi 0, %s92
    %s95 = sphi 0, %s94
    %s109 = sphi 0, %s95
    %s113 = sphi 0, %s113
    %s115 = sphi 0, %s113
    %s116 = sphi 0, %s115
    %s130 = sphi 0, %s116
    %s134 = sphi 0, %s134
    %s136 = sphi 0, %s134
    %s137 = sphi 0, %s136
    %s151 = sphi 0, %s137
    %s155 = sphi 0, %s155
    %s157 = sphi 0, %s155
    %s158 = sphi 0, %s157
    %s172 = sphi 0, %s158
    %s176 = sphi 0, %s176
    %s178 = sphi 0, %s176
    %s179 = sphi 0, %s178
    %s193 = sphi 0, %s179
    %s199 = sphi 0, %s201
    %s202 = sphi 0, %s199
    %s203 = sphi 0, %s202
    %s219 = sphi 0, %s203
  $region4: #{tpu_custom_call.1} parent=0 // loop_header_branch
    %19 = sbr.rel (%p17) target = $region8
  $region5: #{tpu_custom_call.1} parent=0 // loop_body
    %s21 = ssub.s32 %s16, 1
    %s22 = ssub.s32 %s16, 2
    %s23 = sadd.s32 %s16, 1
    %s24 = ssub.s32 %s16, %s23
    %p25 = scmp.eq.s32.totalorder %s24, 0
    %s27 = sadd.s32 %s26, 1
    %s28 = scalar_select %p25, %s26, %s27
    %p31 = pneg %p25
    %p32 = scmp.eq.s32.totalorder %s16, 1
    %p33 = por %p31, %p32
    %p34 = scmp.ne.s32.totalorder %s26, %s29
    %p35 = scmp.eq.s32.totalorder %s16, 0
    %p36 = por %p34, %p35
    %p37 = scmp.ne.s32.totalorder %s26, %s29
    %p38 = scmp.eq.s32.totalorder %s21, 1
    %p39 = por %p37, %p38
    %p40 = scmp.ne.s32.totalorder %s29, %s30
    %p41 = scmp.eq.s32.totalorder %s21, 0
    %p42 = por %p40, %p41
    %p43 = scmp.ne.s32.totalorder %s29, %s30
    %p44 = scmp.eq.s32.totalorder %s22, 1
    %p45 = por %p43, %p44
    %p47 = scmp.ne.s32.totalorder %s30, %s46
    %p48 = scmp.eq.s32.totalorder %s22, 0
    %p49 = por %p47, %p48
    %s51 = sadd.s32 %s50, 1
    %p54 = scmp.eq.s32.totalorder %s16, 1
    %p55 = scmp.ne.s32.totalorder %s50, %s52
    %p56 = scmp.eq.s32.totalorder %s16, 0
    %p57 = por %p55, %p56
    %p58 = scmp.ne.s32.totalorder %s50, %s52
    %p59 = scmp.eq.s32.totalorder %s21, 1
    %p60 = por %p58, %p59
    %p61 = scmp.ne.s32.totalorder %s52, %s53
    %p62 = scmp.eq.s32.totalorder %s21, 0
    %p63 = por %p61, %p62
    %p64 = scmp.ne.s32.totalorder %s52, %s53
    %p65 = scmp.eq.s32.totalorder %s22, 1
    %p66 = por %p64, %p65
    %p68 = scmp.ne.s32.totalorder %s53, %s67
    %p69 = scmp.eq.s32.totalorder %s22, 0
    %p70 = por %p68, %p69
    %s72 = sadd.s32 %s71, 1
    %p75 = scmp.eq.s32.totalorder %s16, 1
    %p76 = scmp.ne.s32.totalorder %s71, %s73
    %p77 = scmp.eq.s32.totalorder %s16, 0
    %p78 = por %p76, %p77
    %p79 = scmp.ne.s32.totalorder %s71, %s73
    %p80 = scmp.eq.s32.totalorder %s21, 1
    %p81 = por %p79, %p80
    %p82 = scmp.ne.s32.totalorder %s73, %s74
    %p83 = scmp.eq.s32.totalorder %s21, 0
    %p84 = por %p82, %p83
    %p85 = scmp.ne.s32.totalorder %s73, %s74
    %p86 = scmp.eq.s32.totalorder %s22, 1
    %p87 = por %p85, %p86
    %p89 = scmp.ne.s32.totalorder %s74, %s88
    %p90 = scmp.eq.s32.totalorder %s22, 0
    %p91 = por %p89, %p90
    %s93 = sadd.s32 %s92, 1
    %p96 = scmp.eq.s32.totalorder %s16, 1
    %p97 = scmp.ne.s32.totalorder %s92, %s94
    %p98 = scmp.eq.s32.totalorder %s16, 0
    %p99 = por %p97, %p98
    %p100 = scmp.ne.s32.totalorder %s92, %s94
    %p101 = scmp.eq.s32.totalorder %s21, 1
    %p102 = por %p100, %p101
    %p103 = scmp.ne.s32.totalorder %s94, %s95
    %p104 = scmp.eq.s32.totalorder %s21, 0
    %p105 = por %p103, %p104
    %p106 = scmp.ne.s32.totalorder %s94, %s95
    %p107 = scmp.eq.s32.totalorder %s22, 1
    %p108 = por %p106, %p107
    %p110 = scmp.ne.s32.totalorder %s95, %s109
    %p111 = scmp.eq.s32.totalorder %s22, 0
    %p112 = por %p110, %p111
    %s114 = sadd.s32 %s113, 1
    %p117 = scmp.eq.s32.totalorder %s16, 1
    %p118 = scmp.ne.s32.totalorder %s113, %s115
    %p119 = scmp.eq.s32.totalorder %s16, 0
    %p120 = por %p118, %p119
    %p121 = scmp.ne.s32.totalorder %s113, %s115
    %p122 = scmp.eq.s32.totalorder %s21, 1
    %p123 = por %p121, %p122
    %p124 = scmp.ne.s32.totalorder %s115, %s116
    %p125 = scmp.eq.s32.totalorder %s21, 0
    %p126 = por %p124, %p125
    %p127 = scmp.ne.s32.totalorder %s115, %s116
    %p128 = scmp.eq.s32.totalorder %s22, 1
    %p129 = por %p127, %p128
    %p131 = scmp.ne.s32.totalorder %s116, %s130
    %p132 = scmp.eq.s32.totalorder %s22, 0
    %p133 = por %p131, %p132
    %s135 = sadd.s32 %s134, 1
    %p138 = scmp.eq.s32.totalorder %s16, 1
    %p139 = scmp.ne.s32.totalorder %s134, %s136
    %p140 = scmp.eq.s32.totalorder %s16, 0
    %p141 = por %p139, %p140
    %p142 = scmp.ne.s32.totalorder %s134, %s136
    %p143 = scmp.eq.s32.totalorder %s21, 1
    %p144 = por %p142, %p143
    %p145 = scmp.ne.s32.totalorder %s136, %s137
    %p146 = scmp.eq.s32.totalorder %s21, 0
    %p147 = por %p145, %p146
    %p148 = scmp.ne.s32.totalorder %s136, %s137
    %p149 = scmp.eq.s32.totalorder %s22, 1
    %p150 = por %p148, %p149
    %p152 = scmp.ne.s32.totalorder %s137, %s151
    %p153 = scmp.eq.s32.totalorder %s22, 0
    %p154 = por %p152, %p153
    %s156 = sadd.s32 %s155, 1
    %p159 = scmp.eq.s32.totalorder %s16, 1
    %p160 = scmp.ne.s32.totalorder %s155, %s157
    %p161 = scmp.eq.s32.totalorder %s16, 0
    %p162 = por %p160, %p161
    %p163 = scmp.ne.s32.totalorder %s155, %s157
    %p164 = scmp.eq.s32.totalorder %s21, 1
    %p165 = por %p163, %p164
    %p166 = scmp.ne.s32.totalorder %s157, %s158
    %p167 = scmp.eq.s32.totalorder %s21, 0
    %p168 = por %p166, %p167
    %p169 = scmp.ne.s32.totalorder %s157, %s158
    %p170 = scmp.eq.s32.totalorder %s22, 1
    %p171 = por %p169, %p170
    %p173 = scmp.ne.s32.totalorder %s158, %s172
    %p174 = scmp.eq.s32.totalorder %s22, 0
    %p175 = por %p173, %p174
    %s177 = sadd.s32 %s176, 1
    %p180 = scmp.eq.s32.totalorder %s16, 1
    %p181 = scmp.ne.s32.totalorder %s176, %s178
    %p182 = scmp.eq.s32.totalorder %s16, 0
    %p183 = por %p181, %p182
    %p184 = scmp.ne.s32.totalorder %s176, %s178
    %p185 = scmp.eq.s32.totalorder %s21, 1
    %p186 = por %p184, %p185
    %p187 = scmp.ne.s32.totalorder %s178, %s179
    %p188 = scmp.eq.s32.totalorder %s21, 0
    %p189 = por %p187, %p188
    %p190 = scmp.ne.s32.totalorder %s178, %s179
    %p191 = scmp.eq.s32.totalorder %s22, 1
    %p192 = por %p190, %p191
    %p194 = scmp.ne.s32.totalorder %s179, %s193
    %p195 = scmp.eq.s32.totalorder %s22, 0
    %p196 = por %p194, %p195
    %s197 = ssub.s32 %s16, %s23
    %p198 = scmp.eq.s32.totalorder %s197, 0
    %s200 = sadd.s32 %s199, 1
    %s201 = scalar_select %p198, %s199, %s200
    %p204 = pneg %p198
    %p205 = scmp.eq.s32.totalorder %s16, 1
    %p206 = por %p204, %p205
    %p207 = scmp.ne.s32.totalorder %s199, %s202
    %p208 = scmp.eq.s32.totalorder %s16, 0
    %p209 = por %p207, %p208
    %p210 = scmp.ne.s32.totalorder %s199, %s202
    %p211 = scmp.eq.s32.totalorder %s21, 1
    %p212 = por %p210, %p211
    %p213 = scmp.ne.s32.totalorder %s202, %s203
    %p214 = scmp.eq.s32.totalorder %s21, 0
    %p215 = por %p213, %p214
    %p216 = scmp.ne.s32.totalorder %s202, %s203
    %p217 = scmp.eq.s32.totalorder %s22, 1
    %p218 = por %p216, %p217
    %p220 = scmp.ne.s32.totalorder %s203, %s219
    %p221 = scmp.eq.s32.totalorder %s22, 0
    %p222 = por %p220, %p221
    %p223 = scmp.le.s32.totalorder 1, %s16
    %p224 = scmp.lt.s32.totalorder %s16, 3
    %p225 = pnand %p223, %p224
    %p226 = pneg %p225
    // Predicated region
    $region9: #{tpu_custom_call.1} parent=5 // pred_check
      _
    $region10: #{tpu_custom_call.1} parent=5 // pred_check_branch
      %228 = sbr.rel (%p225) target = $region12
    $region11: #{tpu_custom_call.1} parent=5 // pred_region
      %s229 = ssub.s32 %s16, 1
      // Predicated region
      $region13: #{tpu_custom_call.1} parent=11 // pred_check
        %p230 = pneg %p63
      $region14: #{tpu_custom_call.1} parent=11 // pred_check_branch
        %232 = sbr.rel (%p230) target = $region16
      $region15: #{tpu_custom_call.1} parent=11 // pred_region
        _
      $region16: #{tpu_custom_call.1} parent=11 // pred_fallthru
        _
      // Predicated region
      $region17: #{tpu_custom_call.1} parent=11 // pred_check
        %p233 = pneg %p84
      $region18: #{tpu_custom_call.1} parent=11 // pred_check_branch
        %235 = sbr.rel (%p233) target = $region20
      $region19: #{tpu_custom_call.1} parent=11 // pred_region
        _
      $region20: #{tpu_custom_call.1} parent=11 // pred_fallthru
        _
      // Predicated region
      $region21: #{tpu_custom_call.1} parent=11 // pred_check
        %p236 = pneg %p105
      $region22: #{tpu_custom_call.1} parent=11 // pred_check_branch
        %238 = sbr.rel (%p236) target = $region24
      $region23: #{tpu_custom_call.1} parent=11 // pred_region
        _
      $region24: #{tpu_custom_call.1} parent=11 // pred_fallthru
        _
      // Predicated region
      $region25: #{tpu_custom_call.1} parent=11 // pred_check
        %p239 = pneg %p126
      $region26: #{tpu_custom_call.1} parent=11 // pred_check_branch
        %241 = sbr.rel (%p239) target = $region28
      $region27: #{tpu_custom_call.1} parent=11 // pred_region
        _
      $region28: #{tpu_custom_call.1} parent=11 // pred_fallthru
        _
      // Predicated region
      $region29: #{tpu_custom_call.1} parent=11 // pred_check
        %p242 = pneg %p147
      $region30: #{tpu_custom_call.1} parent=11 // pred_check_branch
        %244 = sbr.rel (%p242) target = $region32
      $region31: #{tpu_custom_call.1} parent=11 // pred_region
        _
      $region32: #{tpu_custom_call.1} parent=11 // pred_fallthru
        _
      // Predicated region
      $region33: #{tpu_custom_call.1} parent=11 // pred_check
        %p245 = pneg %p168
      $region34: #{tpu_custom_call.1} parent=11 // pred_check_branch
        %247 = sbr.rel (%p245) target = $region36
      $region35: #{tpu_custom_call.1} parent=11 // pred_region
        _
      $region36: #{tpu_custom_call.1} parent=11 // pred_fallthru
        _
      // Predicated region
      $region37: #{tpu_custom_call.1} parent=11 // pred_check
        %p248 = pneg %p189
      $region38: #{tpu_custom_call.1} parent=11 // pred_check_branch
        %250 = sbr.rel (%p248) target = $region40
      $region39: #{tpu_custom_call.1} parent=11 // pred_region
        _
      $region40: #{tpu_custom_call.1} parent=11 // pred_fallthru
        _
    $region12: #{tpu_custom_call.1} parent=5 // pred_fallthru
      _
    %p251 = scmp.lt.s32.totalorder %s16, 2
    // Predicated region
    $region41: #{tpu_custom_call.1} parent=5 // pred_check
      %p252 = pneg %p251
    $region42: #{tpu_custom_call.1} parent=5 // pred_check_branch
      %254 = sbr.rel (%p252) target = $region44
    $region43: #{tpu_custom_call.1} parent=5 // pred_region
      // Predicated region
      $region45: #{tpu_custom_call.1} parent=43 // pred_check
        %p255 = pneg %p36
      $region46: #{tpu_custom_call.1} parent=43 // pred_check_branch
        %257 = sbr.rel (%p255) target = $region48
      $region47: #{tpu_custom_call.1} parent=43 // pred_region
        %s258 = smul.u32 64, %s16
        %p259 = scmp.lt.s32.totalorder %s258, 127
        %s260 = scalar_select %p259, %s258, 127
        %s261 = smul.addr %s260, 4
        %s262 = scalar_lea.vmem %s0, %s261
        %s263 = smul.u32 64, %s16
      $region48: #{tpu_custom_call.1} parent=43 // pred_fallthru
        _
    $region44: #{tpu_custom_call.1} parent=5 // pred_fallthru
      _
    %p264 = scmp.le.s32.totalorder 1, %s16
    %p265 = scmp.lt.s32.totalorder %s16, 3
    %p266 = pnand %p264, %p265
    %p267 = pneg %p266
    // Predicated region
    $region49: #{tpu_custom_call.1} parent=5 // pred_check
      _
    $region50: #{tpu_custom_call.1} parent=5 // pred_check_branch
      %269 = sbr.rel (%p266) target = $region52
    $region51: #{tpu_custom_call.1} parent=5 // pred_region
      %s270 = ssub.s32 %s16, 1
      %s271 = smul.u32 64, %s21
      %p272 = scmp.lt.s32.totalorder %s271, 127
      %s273 = scalar_select %p272, %s271, 127
      %s274 = smul.addr %s273, 4
      %s275 = scalar_lea.vmem %s0, %s274
      %p276 = pneg %p42
      %p277 = pneg %p39
      %p278 = pneg %p63
      %p279 = pneg %p60
      %p280 = pneg %p84
      %p281 = pneg %p81
      %p282 = pneg %p105
      %p283 = pneg %p102
      %p284 = pneg %p126
      %p285 = pneg %p123
      %p286 = pneg %p147
      %p287 = pneg %p144
      %p288 = pneg %p168
      %p289 = pneg %p165
      %p290 = pneg %p189
      %p291 = pneg %p186
      %p292 = pneg %p215
      %p293 = pneg %p212
      %s294 = smul.u32 64, %s21
      %p295 = scmp.lt.s32.totalorder %s294, 127
      %s296 = scalar_select %p295, %s294, 127
      %s297 = smul.addr %s296, 8
      %s298 = scalar_lea.vmem %s8, %s297
      %s299 = smul.u32 64, %s21
      %p300 = scmp.lt.s32.totalorder %s299, 127
      %s301 = scalar_select %p300, %s299, 127
      %s302 = smul.addr %s301, 4
      %s303 = scalar_lea.vmem %s0, %s302
      %s304 = smul.u32 64, %s21
      %s305 = smul.u32 64, %s21
      %p306 = scmp.lt.s32.totalorder %s305, 127
      %s307 = scalar_select %p306, %s305, 127
      %s308 = smul.addr %s307, 8
      %s309 = scalar_lea.vmem %s8, %s308
      %s310 = smul.u32 64, %s21
      %v312 = vld [vmem:[%s303] sm:$0xf]
      %v313 = vld [vmem:[%s303 + $0x4] sm:$0xf]
      %v314 = vld [vmem:[%s303 + $0x8] sm:$0xf]
      %v315 = vld [vmem:[%s303 + $0xc] sm:$0xf]
      %v316 = vld [vmem:[%s303 + $0x10] sm:$0xf]
      %v317 = vld [vmem:[%s303 + $0x14] sm:$0xf]
      %v318 = vld [vmem:[%s303 + $0x18] sm:$0xf]
      %v319 = vld [vmem:[%s303 + $0x1c] sm:$0xf]
      %v320 = vld [vmem:[%s303 + $0x20] sm:$0xf]
      %v321 = vld [vmem:[%s303 + $0x24] sm:$0xf]
      %v322 = vld [vmem:[%s303 + $0x28] sm:$0xf]
      %v323 = vld [vmem:[%s303 + $0x2c] sm:$0xf]
      %v324 = vld [vmem:[%s303 + $0x30] sm:$0xf]
      %v325 = vld [vmem:[%s303 + $0x34] sm:$0xf]
      %v326 = vld [vmem:[%s303 + $0x38] sm:$0xf]
      %v327 = vld [vmem:[%s303 + $0x3c] sm:$0xf]
      %v328 = vld [vmem:[%s303 + $0x40] sm:$0xf]
      %v329 = vld [vmem:[%s303 + $0x44] sm:$0xf]
      %v330 = vld [vmem:[%s303 + $0x48] sm:$0xf]
      %v331 = vld [vmem:[%s303 + $0x4c] sm:$0xf]
      %v332 = vld [vmem:[%s303 + $0x50] sm:$0xf]
      %v333 = vld [vmem:[%s303 + $0x54] sm:$0xf]
      %v334 = vld [vmem:[%s303 + $0x58] sm:$0xf]
      %v335 = vld [vmem:[%s303 + $0x5c] sm:$0xf]
      %v336 = vld [vmem:[%s303 + $0x60] sm:$0xf]
      %v337 = vld [vmem:[%s303 + $0x64] sm:$0xf]
      %v338 = vld [vmem:[%s303 + $0x68] sm:$0xf]
      %v339 = vld [vmem:[%s303 + $0x6c] sm:$0xf]
      %v340 = vld [vmem:[%s303 + $0x70] sm:$0xf]
      %v341 = vld [vmem:[%s303 + $0x74] sm:$0xf]
      %v342 = vld [vmem:[%s303 + $0x78] sm:$0xf]
      %v343 = vld [vmem:[%s303 + $0x7c] sm:$0xf]
      %v344 = vld [vmem:[%s303 + $0x80] sm:$0xf]
      %v345 = vld [vmem:[%s303 + $0x84] sm:$0xf]
      %v346 = vld [vmem:[%s303 + $0x88] sm:$0xf]
      %v347 = vld [vmem:[%s303 + $0x8c] sm:$0xf]
      %v348 = vld [vmem:[%s303 + $0x90] sm:$0xf]
      %v349 = vld [vmem:[%s303 + $0x94] sm:$0xf]
      %v350 = vld [vmem:[%s303 + $0x98] sm:$0xf]
      %v351 = vld [vmem:[%s303 + $0x9c] sm:$0xf]
      %v352 = vld [vmem:[%s303 + $0xa0] sm:$0xf]
      %v353 = vld [vmem:[%s303 + $0xa4] sm:$0xf]
      %v354 = vld [vmem:[%s303 + $0xa8] sm:$0xf]
      %v355 = vld [vmem:[%s303 + $0xac] sm:$0xf]
      %v356 = vld [vmem:[%s303 + $0xb0] sm:$0xf]
      %v357 = vld [vmem:[%s303 + $0xb4] sm:$0xf]
      %v358 = vld [vmem:[%s303 + $0xb8] sm:$0xf]
      %v359 = vld [vmem:[%s303 + $0xbc] sm:$0xf]
      %v360 = vld [vmem:[%s303 + $0xc0] sm:$0xf]
      %v361 = vld [vmem:[%s303 + $0xc4] sm:$0xf]
      %v362 = vld [vmem:[%s303 + $0xc8] sm:$0xf]
      %v363 = vld [vmem:[%s303 + $0xcc] sm:$0xf]
      %v364 = vld [vmem:[%s303 + $0xd0] sm:$0xf]
      %v365 = vld [vmem:[%s303 + $0xd4] sm:$0xf]
      %v366 = vld [vmem:[%s303 + $0xd8] sm:$0xf]
      %v367 = vld [vmem:[%s303 + $0xdc] sm:$0xf]
      %v368 = vld [vmem:[%s303 + $0xe0] sm:$0xf]
      %v369 = vld [vmem:[%s303 + $0xe4] sm:$0xf]
      %v370 = vld [vmem:[%s303 + $0xe8] sm:$0xf]
      %v371 = vld [vmem:[%s303 + $0xec] sm:$0xf]
      %v372 = vld [vmem:[%s303 + $0xf0] sm:$0xf]
      %v373 = vld [vmem:[%s303 + $0xf4] sm:$0xf]
      %v374 = vld [vmem:[%s303 + $0xf8] sm:$0xf]
      %v375 = vld [vmem:[%s303 + $0xfc] sm:$0xf]
      %v376 = vunpack.c.l.bf16 %v312
      %v377 = vunpack.c.l.bf16 %v313
      %v378 = vunpack.c.l.bf16 %v314
      %v379 = vunpack.c.l.bf16 %v315
      %v380 = vunpack.c.l.bf16 %v316
      %v381 = vunpack.c.l.bf16 %v317
      %v382 = vunpack.c.l.bf16 %v318
      %v383 = vunpack.c.l.bf16 %v319
      %v384 = vunpack.c.l.bf16 %v320
      %v385 = vunpack.c.l.bf16 %v321
      %v386 = vunpack.c.l.bf16 %v322
      %v387 = vunpack.c.l.bf16 %v323
      %v388 = vunpack.c.l.bf16 %v324
      %v389 = vunpack.c.l.bf16 %v325
      %v390 = vunpack.c.l.bf16 %v326
      %v391 = vunpack.c.l.bf16 %v327
      %v392 = vunpack.c.l.bf16 %v328
      %v393 = vunpack.c.l.bf16 %v329
      %v394 = vunpack.c.l.bf16 %v330
      %v395 = vunpack.c.l.bf16 %v331
      %v396 = vunpack.c.l.bf16 %v332
      %v397 = vunpack.c.l.bf16 %v333
      %v398 = vunpack.c.l.bf16 %v334
      %v399 = vunpack.c.l.bf16 %v335
      %v400 = vunpack.c.l.bf16 %v336
      %v401 = vunpack.c.l.bf16 %v337
      %v402 = vunpack.c.l.bf16 %v338
      %v403 = vunpack.c.l.bf16 %v339
      %v404 = vunpack.c.l.bf16 %v340
      %v405 = vunpack.c.l.bf16 %v341
      %v406 = vunpack.c.l.bf16 %v342
      %v407 = vunpack.c.l.bf16 %v343
      %v408 = vunpack.c.l.bf16 %v344
      %v409 = vunpack.c.l.bf16 %v345
      %v410 = vunpack.c.l.bf16 %v346
      %v411 = vunpack.c.l.bf16 %v347
      %v412 = vunpack.c.l.bf16 %v348
      %v413 = vunpack.c.l.bf16 %v349
      %v414 = vunpack.c.l.bf16 %v350
      %v415 = vunpack.c.l.bf16 %v351
      %v416 = vunpack.c.l.bf16 %v352
      %v417 = vunpack.c.l.bf16 %v353
      %v418 = vunpack.c.l.bf16 %v354
      %v419 = vunpack.c.l.bf16 %v355
      %v420 = vunpack.c.l.bf16 %v356
      %v421 = vunpack.c.l.bf16 %v357
      %v422 = vunpack.c.l.bf16 %v358
      %v423 = vunpack.c.l.bf16 %v359
      %v424 = vunpack.c.l.bf16 %v360
      %v425 = vunpack.c.l.bf16 %v361
      %v426 = vunpack.c.l.bf16 %v362
      %v427 = vunpack.c.l.bf16 %v363
      %v428 = vunpack.c.l.bf16 %v364
      %v429 = vunpack.c.l.bf16 %v365
      %v430 = vunpack.c.l.bf16 %v366
      %v431 = vunpack.c.l.bf16 %v367
      %v432 = vunpack.c.l.bf16 %v368
      %v433 = vunpack.c.l.bf16 %v369
      %v434 = vunpack.c.l.bf16 %v370
      %v435 = vunpack.c.l.bf16 %v371
      %v436 = vunpack.c.l.bf16 %v372
      %v437 = vunpack.c.l.bf16 %v373
      %v438 = vunpack.c.l.bf16 %v374
      %v439 = vunpack.c.l.bf16 %v375
      %504 = vrot.lane.b32.xlu0 %v376, 112
      %v505 = vpop.permute.xlu0 %504
      %506 = vrot.lane.b32.xlu0 %v377, 112
      %v507 = vpop.permute.xlu0 %506
      %508 = vrot.lane.b32.xlu0 %v378, 112
      %v509 = vpop.permute.xlu0 %508
      %510 = vrot.lane.b32.xlu0 %v379, 112
      %v511 = vpop.permute.xlu0 %510
      %512 = vrot.lane.b32.xlu0 %v380, 112
      %v513 = vpop.permute.xlu0 %512
      %514 = vrot.lane.b32.xlu0 %v381, 112
      %v515 = vpop.permute.xlu0 %514
      %516 = vrot.lane.b32.xlu0 %v382, 112
      %v517 = vpop.permute.xlu0 %516
      %518 = vrot.lane.b32.xlu0 %v383, 112
      %v519 = vpop.permute.xlu0 %518
      %520 = vrot.lane.b32.xlu0 %v384, 112
      %v521 = vpop.permute.xlu0 %520
      %522 = vrot.lane.b32.xlu0 %v385, 112
      %v523 = vpop.permute.xlu0 %522
      %524 = vrot.lane.b32.xlu0 %v386, 112
      %v525 = vpop.permute.xlu0 %524
      %526 = vrot.lane.b32.xlu0 %v387, 112
      %v527 = vpop.permute.xlu0 %526
      %528 = vrot.lane.b32.xlu0 %v388, 112
      %v529 = vpop.permute.xlu0 %528
      %530 = vrot.lane.b32.xlu0 %v389, 112
      %v531 = vpop.permute.xlu0 %530
      %532 = vrot.lane.b32.xlu0 %v390, 112
      %v533 = vpop.permute.xlu0 %532
      %534 = vrot.lane.b32.xlu0 %v391, 112
      %v535 = vpop.permute.xlu0 %534
      %536 = vrot.lane.b32.xlu0 %v392, 112
      %v537 = vpop.permute.xlu0 %536
      %538 = vrot.lane.b32.xlu0 %v393, 112
      %v539 = vpop.permute.xlu0 %538
      %540 = vrot.lane.b32.xlu0 %v394, 112
      %v541 = vpop.permute.xlu0 %540
      %542 = vrot.lane.b32.xlu0 %v395, 112
      %v543 = vpop.permute.xlu0 %542
      %544 = vrot.lane.b32.xlu0 %v396, 112
      %v545 = vpop.permute.xlu0 %544
      %546 = vrot.lane.b32.xlu0 %v397, 112
      %v547 = vpop.permute.xlu0 %546
      %548 = vrot.lane.b32.xlu0 %v398, 112
      %v549 = vpop.permute.xlu0 %548
      %550 = vrot.lane.b32.xlu0 %v399, 112
      %v551 = vpop.permute.xlu0 %550
      %552 = vrot.lane.b32.xlu0 %v400, 112
      %v553 = vpop.permute.xlu0 %552
      %554 = vrot.lane.b32.xlu0 %v401, 112
      %v555 = vpop.permute.xlu0 %554
      %556 = vrot.lane.b32.xlu0 %v402, 112
      %v557 = vpop.permute.xlu0 %556
      %558 = vrot.lane.b32.xlu0 %v403, 112
      %v559 = vpop.permute.xlu0 %558
      %560 = vrot.lane.b32.xlu0 %v404, 112
      %v561 = vpop.permute.xlu0 %560
      %562 = vrot.lane.b32.xlu0 %v405, 112
      %v563 = vpop.permute.xlu0 %562
      %564 = vrot.lane.b32.xlu0 %v406, 112
      %v565 = vpop.permute.xlu0 %564
      %566 = vrot.lane.b32.xlu0 %v407, 112
      %v567 = vpop.permute.xlu0 %566
      %568 = vrot.lane.b32.xlu0 %v408, 112
      %v569 = vpop.permute.xlu0 %568
      %570 = vrot.lane.b32.xlu0 %v409, 112
      %v571 = vpop.permute.xlu0 %570
      %572 = vrot.lane.b32.xlu0 %v410, 112
      %v573 = vpop.permute.xlu0 %572
      %574 = vrot.lane.b32.xlu0 %v411, 112
      %v575 = vpop.permute.xlu0 %574
      %576 = vrot.lane.b32.xlu0 %v412, 112
      %v577 = vpop.permute.xlu0 %576
      %578 = vrot.lane.b32.xlu0 %v413, 112
      %v579 = vpop.permute.xlu0 %578
      %580 = vrot.lane.b32.xlu0 %v414, 112
      %v581 = vpop.permute.xlu0 %580
      %582 = vrot.lane.b32.xlu0 %v415, 112
      %v583 = vpop.permute.xlu0 %582
      %584 = vrot.lane.b32.xlu0 %v416, 112
      %v585 = vpop.permute.xlu0 %584
      %586 = vrot.lane.b32.xlu0 %v417, 112
      %v587 = vpop.permute.xlu0 %586
      %588 = vrot.lane.b32.xlu0 %v418, 112
      %v589 = vpop.permute.xlu0 %588
      %590 = vrot.lane.b32.xlu0 %v419, 112
      %v591 = vpop.permute.xlu0 %590
      %592 = vrot.lane.b32.xlu0 %v420, 112
      %v593 = vpop.permute.xlu0 %592
      %594 = vrot.lane.b32.xlu0 %v421, 112
      %v595 = vpop.permute.xlu0 %594
      %596 = vrot.lane.b32.xlu0 %v422, 112
      %v597 = vpop.permute.xlu0 %596
      %598 = vrot.lane.b32.xlu0 %v423, 112
      %v599 = vpop.permute.xlu0 %598
      %600 = vrot.lane.b32.xlu0 %v424, 112
      %v601 = vpop.permute.xlu0 %600
      %602 = vrot.lane.b32.xlu0 %v425, 112
      %v603 = vpop.permute.xlu0 %602
      %604 = vrot.lane.b32.xlu0 %v426, 112
      %v605 = vpop.permute.xlu0 %604
      %606 = vrot.lane.b32.xlu0 %v427, 112
      %v607 = vpop.permute.xlu0 %606
      %608 = vrot.lane.b32.xlu0 %v428, 112
      %v609 = vpop.permute.xlu0 %608
      %610 = vrot.lane.b32.xlu0 %v429, 112
      %v611 = vpop.permute.xlu0 %610
      %612 = vrot.lane.b32.xlu0 %v430, 112
      %v613 = vpop.permute.xlu0 %612
      %614 = vrot.lane.b32.xlu0 %v431, 112
      %v615 = vpop.permute.xlu0 %614
      %616 = vrot.lane.b32.xlu0 %v432, 112
      %v617 = vpop.permute.xlu0 %616
      %618 = vrot.lane.b32.xlu0 %v433, 112
      %v619 = vpop.permute.xlu0 %618
      %620 = vrot.lane.b32.xlu0 %v434, 112
      %v621 = vpop.permute.xlu0 %620
      %622 = vrot.lane.b32.xlu0 %v435, 112
      %v623 = vpop.permute.xlu0 %622
      %624 = vrot.lane.b32.xlu0 %v436, 112
      %v625 = vpop.permute.xlu0 %624
      %626 = vrot.lane.b32.xlu0 %v437, 112
      %v627 = vpop.permute.xlu0 %626
      %628 = vrot.lane.b32.xlu0 %v438, 112
      %v629 = vpop.permute.xlu0 %628
      %630 = vrot.lane.b32.xlu0 %v439, 112
      %v631 = vpop.permute.xlu0 %630
      %v696 = vmul.f32 %v376, %v505
      %v697 = vmul.f32 %v377, %v507
      %v698 = vmul.f32 %v378, %v509
      %v699 = vmul.f32 %v379, %v511
      %v700 = vmul.f32 %v380, %v513
      %v701 = vmul.f32 %v381, %v515
      %v702 = vmul.f32 %v382, %v517
      %v703 = vmul.f32 %v383, %v519
      %v704 = vmul.f32 %v384, %v521
      %v705 = vmul.f32 %v385, %v523
      %v706 = vmul.f32 %v386, %v525
      %v707 = vmul.f32 %v387, %v527
      %v708 = vmul.f32 %v388, %v529
      %v709 = vmul.f32 %v389, %v531
      %v710 = vmul.f32 %v390, %v533
      %v711 = vmul.f32 %v391, %v535
      %v712 = vmul.f32 %v392, %v537
      %v713 = vmul.f32 %v393, %v539
      %v714 = vmul.f32 %v394, %v541
      %v715 = vmul.f32 %v395, %v543
      %v716 = vmul.f32 %v396, %v545
      %v717 = vmul.f32 %v397, %v547
      %v718 = vmul.f32 %v398, %v549
      %v719 = vmul.f32 %v399, %v551
      %v720 = vmul.f32 %v400, %v553
      %v721 = vmul.f32 %v401, %v555
      %v722 = vmul.f32 %v402, %v557
      %v723 = vmul.f32 %v403, %v559
      %v724 = vmul.f32 %v404, %v561
      %v725 = vmul.f32 %v405, %v563
      %v726 = vmul.f32 %v406, %v565
      %v727 = vmul.f32 %v407, %v567
      %v728 = vmul.f32 %v408, %v569
      %v729 = vmul.f32 %v409, %v571
      %v730 = vmul.f32 %v410, %v573
      %v731 = vmul.f32 %v411, %v575
      %v732 = vmul.f32 %v412, %v577
      %v733 = vmul.f32 %v413, %v579
      %v734 = vmul.f32 %v414, %v581
      %v735 = vmul.f32 %v415, %v583
      %v736 = vmul.f32 %v416, %v585
      %v737 = vmul.f32 %v417, %v587
      %v738 = vmul.f32 %v418, %v589
      %v739 = vmul.f32 %v419, %v591
      %v740 = vmul.f32 %v420, %v593
      %v741 = vmul.f32 %v421, %v595
      %v742 = vmul.f32 %v422, %v597
      %v743 = vmul.f32 %v423, %v599
      %v744 = vmul.f32 %v424, %v601
      %v745 = vmul.f32 %v425, %v603
      %v746 = vmul.f32 %v426, %v605
      %v747 = vmul.f32 %v427, %v607
      %v748 = vmul.f32 %v428, %v609
      %v749 = vmul.f32 %v429, %v611
      %v750 = vmul.f32 %v430, %v613
      %v751 = vmul.f32 %v431, %v615
      %v752 = vmul.f32 %v432, %v617
      %v753 = vmul.f32 %v433, %v619
      %v754 = vmul.f32 %v434, %v621
      %v755 = vmul.f32 %v435, %v623
      %v756 = vmul.f32 %v436, %v625
      %v757 = vmul.f32 %v437, %v627
      %v758 = vmul.f32 %v438, %v629
      %v759 = vmul.f32 %v439, %v631
      %v760 = vld [vmem:[%s1] sm:$0xf]
      %v761 = vld [vmem:[%s1 + $0x4] sm:$0xf]
      %v762 = vld [vmem:[%s1 + $0x8] sm:$0xf]
      %v763 = vld [vmem:[%s1 + $0xc] sm:$0xf]
      %v764 = vld [vmem:[%s2] sm:$0x1]
      %v766 = vlaneseq
      %v767 = vshrl.u32 %v766, 7
      %v768 = vsub.s32 0, %v767
      %v769 = vrot.slane %v764, %v768
      %v835 = vunpack.c.l.b16 %v312
      %v836 = vunpack.c.l.b16 %v313
      %v837 = vunpack.c.l.b16 %v314
      %v838 = vunpack.c.l.b16 %v315
      %v839 = vunpack.c.l.b16 %v316
      %v840 = vunpack.c.l.b16 %v317
      %v841 = vunpack.c.l.b16 %v318
      %v842 = vunpack.c.l.b16 %v319
      %v843 = vunpack.c.l.b16 %v320
      %v844 = vunpack.c.l.b16 %v321
      %v845 = vunpack.c.l.b16 %v322
      %v846 = vunpack.c.l.b16 %v323
      %v847 = vunpack.c.l.b16 %v324
      %v848 = vunpack.c.l.b16 %v325
      %v849 = vunpack.c.l.b16 %v326
      %v850 = vunpack.c.l.b16 %v327
      %v851 = vunpack.c.l.b16 %v328
      %v852 = vunpack.c.l.b16 %v329
      %v853 = vunpack.c.l.b16 %v330
      %v854 = vunpack.c.l.b16 %v331
      %v855 = vunpack.c.l.b16 %v332
      %v856 = vunpack.c.l.b16 %v333
      %v857 = vunpack.c.l.b16 %v334
      %v858 = vunpack.c.l.b16 %v335
      %v859 = vunpack.c.l.b16 %v336
      %v860 = vunpack.c.l.b16 %v337
      %v861 = vunpack.c.l.b16 %v338
      %v862 = vunpack.c.l.b16 %v339
      %v863 = vunpack.c.l.b16 %v340
      %v864 = vunpack.c.l.b16 %v341
      %v865 = vunpack.c.l.b16 %v342
      %v866 = vunpack.c.l.b16 %v343
      %v867 = vunpack.c.l.b16 %v344
      %v868 = vunpack.c.l.b16 %v345
      %v869 = vunpack.c.l.b16 %v346
      %v870 = vunpack.c.l.b16 %v347
      %v871 = vunpack.c.l.b16 %v348
      %v872 = vunpack.c.l.b16 %v349
      %v873 = vunpack.c.l.b16 %v350
      %v874 = vunpack.c.l.b16 %v351
      %v875 = vunpack.c.l.b16 %v352
      %v876 = vunpack.c.l.b16 %v353
      %v877 = vunpack.c.l.b16 %v354
      %v878 = vunpack.c.l.b16 %v355
      %v879 = vunpack.c.l.b16 %v356
      %v880 = vunpack.c.l.b16 %v357
      %v881 = vunpack.c.l.b16 %v358
      %v882 = vunpack.c.l.b16 %v359
      %v883 = vunpack.c.l.b16 %v360
      %v884 = vunpack.c.l.b16 %v361
      %v885 = vunpack.c.l.b16 %v362
      %v886 = vunpack.c.l.b16 %v363
      %v887 = vunpack.c.l.b16 %v364
      %v888 = vunpack.c.l.b16 %v365
      %v889 = vunpack.c.l.b16 %v366
      %v890 = vunpack.c.l.b16 %v367
      %v891 = vunpack.c.l.b16 %v368
      %v892 = vunpack.c.l.b16 %v369
      %v893 = vunpack.c.l.b16 %v370
      %v894 = vunpack.c.l.b16 %v371
      %v895 = vunpack.c.l.b16 %v372
      %v896 = vunpack.c.l.b16 %v373
      %v897 = vunpack.c.l.b16 %v374
      %v898 = vunpack.c.l.b16 %v375
      %v899 = vpack.c.b16 %v836, %v835
      %v900 = vpack.c.b16 %v838, %v837
      %v901 = vpack.c.b16 %v840, %v839
      %v902 = vpack.c.b16 %v842, %v841
      %v903 = vpack.c.b16 %v844, %v843
      %v904 = vpack.c.b16 %v846, %v845
      %v905 = vpack.c.b16 %v848, %v847
      %v906 = vpack.c.b16 %v850, %v849
      %v907 = vpack.c.b16 %v852, %v851
      %v908 = vpack.c.b16 %v854, %v853
      %v909 = vpack.c.b16 %v856, %v855
      %v910 = vpack.c.b16 %v858, %v857
      %v911 = vpack.c.b16 %v860, %v859
      %v912 = vpack.c.b16 %v862, %v861
      %v913 = vpack.c.b16 %v864, %v863
      %v914 = vpack.c.b16 %v866, %v865
      %v915 = vpack.c.b16 %v868, %v867
      %v916 = vpack.c.b16 %v870, %v869
      %v917 = vpack.c.b16 %v872, %v871
      %v918 = vpack.c.b16 %v874, %v873
      %v919 = vpack.c.b16 %v876, %v875
      %v920 = vpack.c.b16 %v878, %v877
      %v921 = vpack.c.b16 %v880, %v879
      %v922 = vpack.c.b16 %v882, %v881
      %v923 = vpack.c.b16 %v884, %v883
      %v924 = vpack.c.b16 %v886, %v885
      %v925 = vpack.c.b16 %v888, %v887
      %v926 = vpack.c.b16 %v890, %v889
      %v927 = vpack.c.b16 %v892, %v891
      %v928 = vpack.c.b16 %v894, %v893
      %v929 = vpack.c.b16 %v896, %v895
      %v930 = vpack.c.b16 %v898, %v897
      %v935 = vunpack.c.l.b16 %v760
      %v936 = vunpack.c.l.b16 %v761
      %v937 = vunpack.c.l.b16 %v762
      %v938 = vunpack.c.l.b16 %v763
      %v939 = vpack.c.b16 %v936, %v935
      %v940 = vpack.c.b16 %v938, %v937
      %vm943 = vcmask 261120
      %v945 = vsel %vm943, %v899, 0
      %v948 = vsel %vm943, %v900, 0
      %v951 = vsel %vm943, %v901, 0
      %v954 = vsel %vm943, %v902, 0
      %v957 = vsel %vm943, %v903, 0
      %v960 = vsel %vm943, %v904, 0
      %v963 = vsel %vm943, %v905, 0
      %v966 = vsel %vm943, %v906, 0
      %v969 = vsel %vm943, %v907, 0
      %v972 = vsel %vm943, %v908, 0
      %v975 = vsel %vm943, %v909, 0
      %v978 = vsel %vm943, %v910, 0
      %v981 = vsel %vm943, %v911, 0
      %v984 = vsel %vm943, %v912, 0
      %v987 = vsel %vm943, %v913, 0
      %v990 = vsel %vm943, %v914, 0
      %v993 = vsel %vm943, %v915, 0
      %v996 = vsel %vm943, %v916, 0
      %v999 = vsel %vm943, %v917, 0
      %v1002 = vsel %vm943, %v918, 0
      %v1005 = vsel %vm943, %v919, 0
      %v1008 = vsel %vm943, %v920, 0
      %v1011 = vsel %vm943, %v921, 0
      %v1014 = vsel %vm943, %v922, 0
      %v1017 = vsel %vm943, %v923, 0
      %v1020 = vsel %vm943, %v924, 0
      %v1023 = vsel %vm943, %v925, 0
      %v1026 = vsel %vm943, %v926, 0
      %v1029 = vsel %vm943, %v927, 0
      %v1032 = vsel %vm943, %v928, 0
      %v1035 = vsel %vm943, %v929, 0
      %v1038 = vsel %vm943, %v930, 0
      %1040 = vmatprep.subr.bf16.mxu0 0
      %1041 = vmatpush1.bf16.msra.mxu0 %v939
      %1042 = vmatprep.subr.bf16.mxu0 0
      %1043 = vmatpush1.bf16.msra.mxu0 %v940
      %1044 = vmatprep.subr.bf16.mxu0 0
      %1045 = vmatpush1.bf16.msra.mxu0 0
      %1046 = vmatprep.subr.bf16.mxu0 0
      %1047 = vmatpush1.bf16.msra.mxu0 0
      %1048 = vmatprep.subr.bf16.mxu0 0
      %1049 = vmatpush1.bf16.msra.mxu0 0
      %1050 = vmatprep.subr.bf16.mxu0 0
      %1051 = vmatpush1.bf16.msra.mxu0 0
      %1052 = vmatprep.subr.bf16.mxu0 0
      %1053 = vmatpush1.bf16.msra.mxu0 0
      %1054 = vmatprep.subr.bf16.mxu0 0
      %1055 = vmatpush1.bf16.msra.mxu0 0
      %1056 = vmatprep.subr.bf16.mxu0 0
      %1057 = vmatpush1.bf16.msra.mxu0 0
      %1058 = vmatprep.subr.bf16.mxu0 0
      %1059 = vmatpush1.bf16.msra.mxu0 0
      %1060 = vmatprep.subr.bf16.mxu0 0
      %1061 = vmatpush1.bf16.msra.mxu0 0
      %1062 = vmatprep.subr.bf16.mxu0 0
      %1063 = vmatpush1.bf16.msra.mxu0 0
      %1064 = vmatprep.subr.bf16.mxu0 0
      %1065 = vmatpush1.bf16.msra.mxu0 0
      %1066 = vmatprep.subr.bf16.mxu0 0
      %1067 = vmatpush1.bf16.msra.mxu0 0
      %1068 = vmatprep.subr.bf16.mxu0 0
      %1069 = vmatpush1.bf16.msra.mxu0 0
      %1070 = vmatprep.subr.bf16.mxu0 0
      %1071 = vmatpush1.bf16.msra.mxu0 0
      %1072 = vmatprep.mubr.bf16.mxu0 0
      %1073 = vmatmul.mubr.bf16.gmra.mrb[0].mxu0 %v945
      %v1074 = vpop.f32.mrb[0].mxu0
      %v1075 = vadd.f32 %v769, %v1074
      %v1076 = vpop.f32.mrb[0].mxu0
      %v1077 = vpop.f32.mrb[0].mxu0
      %v1078 = vadd.f32 %v769, %v1077
      %v1079 = vpop.f32.mrb[0].mxu0
      %1080 = vmatprep.mubr.bf16.mxu0 0
      %1081 = vmatmul.mubr.bf16.gmra.mrb[0].mxu0 %v948
      %v1082 = vpop.f32.mrb[0].mxu0
      %v1083 = vadd.f32 %v769, %v1082
      %v1084 = vpop.f32.mrb[0].mxu0
      %v1085 = vpop.f32.mrb[0].mxu0
      %v1086 = vadd.f32 %v769, %v1085
      %v1087 = vpop.f32.mrb[0].mxu0
      %1088 = vmatprep.mubr.bf16.mxu0 0
      %1089 = vmatmul.mubr.bf16.gmra.mrb[0].mxu0 %v951
      %v1090 = vpop.f32.mrb[0].mxu0
      %v1091 = vadd.f32 %v769, %v1090
      %v1092 = vpop.f32.mrb[0].mxu0
      %v1093 = vpop.f32.mrb[0].mxu0
      %v1094 = vadd.f32 %v769, %v1093
      %v1095 = vpop.f32.mrb[0].mxu0
      %1096 = vmatprep.mubr.bf16.mxu0 0
      %1097 = vmatmul.mubr.bf16.gmra.mrb[0].mxu0 %v954
      %v1098 = vpop.f32.mrb[0].mxu0
      %v1099 = vadd.f32 %v769, %v1098
      %v1100 = vpop.f32.mrb[0].mxu0
      %v1101 = vpop.f32.mrb[0].mxu0
      %v1102 = vadd.f32 %v769, %v1101
      %v1103 = vpop.f32.mrb[0].mxu0
      %1104 = vmatprep.mubr.bf16.mxu0 0
      %1105 = vmatmul.mubr.bf16.gmra.mrb[0].mxu0 %v957
      %v1106 = vpop.f32.mrb[0].mxu0
      %v1107 = vadd.f32 %v769, %v1106
      %v1108 = vpop.f32.mrb[0].mxu0
      %v1109 = vpop.f32.mrb[0].mxu0
      %v1110 = vadd.f32 %v769, %v1109
      %v1111 = vpop.f32.mrb[0].mxu0
      %1112 = vmatprep.mubr.bf16.mxu0 0
      %1113 = vmatmul.mubr.bf16.gmra.mrb[0].mxu0 %v960
      %v1114 = vpop.f32.mrb[0].mxu0
      %v1115 = vadd.f32 %v769, %v1114
      %v1116 = vpop.f32.mrb[0].mxu0
      %v1117 = vpop.f32.mrb[0].mxu0
      %v1118 = vadd.f32 %v769, %v1117
      %v1119 = vpop.f32.mrb[0].mxu0
      %1120 = vmatprep.mubr.bf16.mxu0 0
      %1121 = vmatmul.mubr.bf16.gmra.mrb[0].mxu0 %v963
      %v1122 = vpop.f32.mrb[0].mxu0
      %v1123 = vadd.f32 %v769, %v1122
      %v1124 = vpop.f32.mrb[0].mxu0
      %v1125 = vpop.f32.mrb[0].mxu0
      %v1126 = vadd.f32 %v769, %v1125
      %v1127 = vpop.f32.mrb[0].mxu0
      %1128 = vmatprep.mubr.bf16.mxu0 0
      %1129 = vmatmul.mubr.bf16.gmra.mrb[0].mxu0 %v966
      %v1130 = vpop.f32.mrb[0].mxu0
      %v1131 = vadd.f32 %v769, %v1130
      %v1132 = vpop.f32.mrb[0].mxu0
      %v1133 = vpop.f32.mrb[0].mxu0
      %v1134 = vadd.f32 %v769, %v1133
      %v1135 = vpop.f32.mrb[0].mxu0
      %1136 = vmatprep.mubr.bf16.mxu0 0
      %1137 = vmatmul.mubr.bf16.gmra.mrb[0].mxu0 %v969
      %v1138 = vpop.f32.mrb[0].mxu0
      %v1139 = vadd.f32 %v769, %v1138
      %v1140 = vpop.f32.mrb[0].mxu0
      %v1141 = vpop.f32.mrb[0].mxu0
      %v1142 = vadd.f32 %v769, %v1141
      %v1143 = vpop.f32.mrb[0].mxu0
      %1144 = vmatprep.mubr.bf16.mxu0 0
      %1145 = vmatmul.mubr.bf16.gmra.mrb[0].mxu0 %v972
      %v1146 = vpop.f32.mrb[0].mxu0
      %v1147 = vadd.f32 %v769, %v1146
      %v1148 = vpop.f32.mrb[0].mxu0
      %v1149 = vpop.f32.mrb[0].mxu0
      %v1150 = vadd.f32 %v769, %v1149
      %v1151 = vpop.f32.mrb[0].mxu0
      %1152 = vmatprep.mubr.bf16.mxu0 0
      %1153 = vmatmul.mubr.bf16.gmra.mrb[0].mxu0 %v975
      %v1154 = vpop.f32.mrb[0].mxu0
      %v1155 = vadd.f32 %v769, %v1154
      %v1156 = vpop.f32.mrb[0].mxu0
      %v1157 = vpop.f32.mrb[0].mxu0
      %v1158 = vadd.f32 %v769, %v1157
      %v1159 = vpop.f32.mrb[0].mxu0
      %1160 = vmatprep.mubr.bf16.mxu0 0
      %1161 = vmatmul.mubr.bf16.gmra.mrb[0].mxu0 %v978
      %v1162 = vpop.f32.mrb[0].mxu0
      %v1163 = vadd.f32 %v769, %v1162
      %v1164 = vpop.f32.mrb[0].mxu0
      %v1165 = vpop.f32.mrb[0].mxu0
      %v1166 = vadd.f32 %v769, %v1165
      %v1167 = vpop.f32.mrb[0].mxu0
      %1168 = vmatprep.mubr.bf16.mxu0 0
      %1169 = vmatmul.mubr.bf16.gmra.mrb[0].mxu0 %v981
      %v1170 = vpop.f32.mrb[0].mxu0
      %v1171 = vadd.f32 %v769, %v1170
      %v1172 = vpop.f32.mrb[0].mxu0
      %v1173 = vpop.f32.mrb[0].mxu0
      %v1174 = vadd.f32 %v769, %v1173
      %v1175 = vpop.f32.mrb[0].mxu0
      %1176 = vmatprep.mubr.bf16.mxu0 0
      %1177 = vmatmul.mubr.bf16.gmra.mrb[0].mxu0 %v984
      %v1178 = vpop.f32.mrb[0].mxu0
      %v1179 = vadd.f32 %v769, %v1178
      %v1180 = vpop.f32.mrb[0].mxu0
      %v1181 = vpop.f32.mrb[0].mxu0
      %v1182 = vadd.f32 %v769, %v1181
      %v1183 = vpop.f32.mrb[0].mxu0
      %1184 = vmatprep.mubr.bf16.mxu0 0
      %1185 = vmatmul.mubr.bf16.gmra.mrb[0].mxu0 %v987
      %v1186 = vpop.f32.mrb[0].mxu0
      %v1187 = vadd.f32 %v769, %v1186
      %v1188 = vpop.f32.mrb[0].mxu0
      %v1189 = vpop.f32.mrb[0].mxu0
      %v1190 = vadd.f32 %v769, %v1189
      %v1191 = vpop.f32.mrb[0].mxu0
      %1192 = vmatprep.mubr.bf16.mxu0 0
      %1193 = vmatmul.mubr.bf16.gmra.mrb[0].mxu0 %v990
      %v1194 = vpop.f32.mrb[0].mxu0
      %v1195 = vadd.f32 %v769, %v1194
      %v1196 = vpop.f32.mrb[0].mxu0
      %v1197 = vpop.f32.mrb[0].mxu0
      %v1198 = vadd.f32 %v769, %v1197
      %v1199 = vpop.f32.mrb[0].mxu0
      %1200 = vmatprep.mubr.bf16.mxu0 0
      %1201 = vmatmul.mubr.bf16.gmra.mrb[0].mxu0 %v993
      %v1202 = vpop.f32.mrb[0].mxu0
      %v1203 = vadd.f32 %v769, %v1202
      %v1204 = vpop.f32.mrb[0].mxu0
      %v1205 = vpop.f32.mrb[0].mxu0
      %v1206 = vadd.f32 %v769, %v1205
      %v1207 = vpop.f32.mrb[0].mxu0
      %1208 = vmatprep.mubr.bf16.mxu0 0
      %1209 = vmatmul.mubr.bf16.gmra.mrb[0].mxu0 %v996
      %v1210 = vpop.f32.mrb[0].mxu0
      %v1211 = vadd.f32 %v769, %v1210
      %v1212 = vpop.f32.mrb[0].mxu0
      %v1213 = vpop.f32.mrb[0].mxu0
      %v1214 = vadd.f32 %v769, %v1213
      %v1215 = vpop.f32.mrb[0].mxu0
      %1216 = vmatprep.mubr.bf16.mxu0 0
      %1217 = vmatmul.mubr.bf16.gmra.mrb[0].mxu0 %v999
      %v1218 = vpop.f32.mrb[0].mxu0
      %v1219 = vadd.f32 %v769, %v1218
      %v1220 = vpop.f32.mrb[0].mxu0
      %v1221 = vpop.f32.mrb[0].mxu0
      %v1222 = vadd.f32 %v769, %v1221
      %v1223 = vpop.f32.mrb[0].mxu0
      %1224 = vmatprep.mubr.bf16.mxu0 0
      %1225 = vmatmul.mubr.bf16.gmra.mrb[0].mxu0 %v1002
      %v1226 = vpop.f32.mrb[0].mxu0
      %v1227 = vadd.f32 %v769, %v1226
      %v1228 = vpop.f32.mrb[0].mxu0
      %v1229 = vpop.f32.mrb[0].mxu0
      %v1230 = vadd.f32 %v769, %v1229
      %v1231 = vpop.f32.mrb[0].mxu0
      %1232 = vmatprep.mubr.bf16.mxu0 0
      %1233 = vmatmul.mubr.bf16.gmra.mrb[0].mxu0 %v1005
      %v1234 = vpop.f32.mrb[0].mxu0
      %v1235 = vadd.f32 %v769, %v1234
      %v1236 = vpop.f32.mrb[0].mxu0
      %v1237 = vpop.f32.mrb[0].mxu0
      %v1238 = vadd.f32 %v769, %v1237
      %v1239 = vpop.f32.mrb[0].mxu0
      %1240 = vmatprep.mubr.bf16.mxu0 0
      %1241 = vmatmul.mubr.bf16.gmra.mrb[0].mxu0 %v1008
      %v1242 = vpop.f32.mrb[0].mxu0
      %v1243 = vadd.f32 %v769, %v1242
      %v1244 = vpop.f32.mrb[0].mxu0
      %v1245 = vpop.f32.mrb[0].mxu0
      %v1246 = vadd.f32 %v769, %v1245
      %v1247 = vpop.f32.mrb[0].mxu0
      %1248 = vmatprep.mubr.bf16.mxu0 0
      %1249 = vmatmul.mubr.bf16.gmra.mrb[0].mxu0 %v1011
      %v1250 = vpop.f32.mrb[0].mxu0
      %v1251 = vadd.f32 %v769, %v1250
      %v1252 = vpop.f32.mrb[0].mxu0
      %v1253 = vpop.f32.mrb[0].mxu0
      %v1254 = vadd.f32 %v769, %v1253
      %v1255 = vpop.f32.mrb[0].mxu0
      %1256 = vmatprep.mubr.bf16.mxu0 0
      %1257 = vmatmul.mubr.bf16.gmra.mrb[0].mxu0 %v1014
      %v1258 = vpop.f32.mrb[0].mxu0
      %v1259 = vadd.f32 %v769, %v1258
      %v1260 = vpop.f32.mrb[0].mxu0
      %v1261 = vpop.f32.mrb[0].mxu0
      %v1262 = vadd.f32 %v769, %v1261
      %v1263 = vpop.f32.mrb[0].mxu0
      %1264 = vmatprep.mubr.bf16.mxu0 0
      %1265 = vmatmul.mubr.bf16.gmra.mrb[0].mxu0 %v1017
      %v1266 = vpop.f32.mrb[0].mxu0
      %v1267 = vadd.f32 %v769, %v1266
      %v1268 = vpop.f32.mrb[0].mxu0
      %v1269 = vpop.f32.mrb[0].mxu0
      %v1270 = vadd.f32 %v769, %v1269
      %v1271 = vpop.f32.mrb[0].mxu0
      %1272 = vmatprep.mubr.bf16.mxu0 0
      %1273 = vmatmul.mubr.bf16.gmra.mrb[0].mxu0 %v1020
      %v1274 = vpop.f32.mrb[0].mxu0
      %v1275 = vadd.f32 %v769, %v1274
      %v1276 = vpop.f32.mrb[0].mxu0
      %v1277 = vpop.f32.mrb[0].mxu0
      %v1278 = vadd.f32 %v769, %v1277
      %v1279 = vpop.f32.mrb[0].mxu0
      %1280 = vmatprep.mubr.bf16.mxu0 0
      %1281 = vmatmul.mubr.bf16.gmra.mrb[0].mxu0 %v1023
      %v1282 = vpop.f32.mrb[0].mxu0
      %v1283 = vadd.f32 %v769, %v1282
      %v1284 = vpop.f32.mrb[0].mxu0
      %v1285 = vpop.f32.mrb[0].mxu0
      %v1286 = vadd.f32 %v769, %v1285
      %v1287 = vpop.f32.mrb[0].mxu0
      %1288 = vmatprep.mubr.bf16.mxu0 0
      %1289 = vmatmul.mubr.bf16.gmra.mrb[0].mxu0 %v1026
      %v1290 = vpop.f32.mrb[0].mxu0
      %v1291 = vadd.f32 %v769, %v1290
      %v1292 = vpop.f32.mrb[0].mxu0
      %v1293 = vpop.f32.mrb[0].mxu0
      %v1294 = vadd.f32 %v769, %v1293
      %v1295 = vpop.f32.mrb[0].mxu0
      %1296 = vmatprep.mubr.bf16.mxu0 0
      %1297 = vmatmul.mubr.bf16.gmra.mrb[0].mxu0 %v1029
      %v1298 = vpop.f32.mrb[0].mxu0
      %v1299 = vadd.f32 %v769, %v1298
      %v1300 = vpop.f32.mrb[0].mxu0
      %v1301 = vpop.f32.mrb[0].mxu0
      %v1302 = vadd.f32 %v769, %v1301
      %v1303 = vpop.f32.mrb[0].mxu0
      %1304 = vmatprep.mubr.bf16.mxu0 0
      %1305 = vmatmul.mubr.bf16.gmra.mrb[0].mxu0 %v1032
      %v1306 = vpop.f32.mrb[0].mxu0
      %v1307 = vadd.f32 %v769, %v1306
      %v1308 = vpop.f32.mrb[0].mxu0
      %v1309 = vpop.f32.mrb[0].mxu0
      %v1310 = vadd.f32 %v769, %v1309
      %v1311 = vpop.f32.mrb[0].mxu0
      %1312 = vmatprep.mubr.bf16.mxu0 0
      %1313 = vmatmul.mubr.bf16.gmra.mrb[0].mxu0 %v1035
      %v1314 = vpop.f32.mrb[0].mxu0
      %v1315 = vadd.f32 %v769, %v1314
      %v1316 = vpop.f32.mrb[0].mxu0
      %v1317 = vpop.f32.mrb[0].mxu0
      %v1318 = vadd.f32 %v769, %v1317
      %v1319 = vpop.f32.mrb[0].mxu0
      %1320 = vmatprep.mubr.bf16.mxu0 0
      %1321 = vmatmul.mubr.bf16.gmra.mrb[0].mxu0 %v1038
      %v1322 = vpop.f32.mrb[0].mxu0
      %v1323 = vadd.f32 %v769, %v1322
      %v1324 = vpop.f32.mrb[0].mxu0
      %v1325 = vpop.f32.mrb[0].mxu0
      %v1326 = vadd.f32 %v769, %v1325
      %v1327 = vpop.f32.mrb[0].mxu0
      %1328 = vdwg.mxu0
      %v1329 = vmax.f32 %v1075, 0.0
      %v1330 = vmax.f32 %v1078, 0.0
      %v1331 = vmax.f32 %v1083, 0.0
      %v1332 = vmax.f32 %v1086, 0.0
      %v1333 = vmax.f32 %v1091, 0.0
      %v1334 = vmax.f32 %v1094, 0.0
      %v1335 = vmax.f32 %v1099, 0.0
      %v1336 = vmax.f32 %v1102, 0.0
      %v1337 = vmax.f32 %v1107, 0.0
      %v1338 = vmax.f32 %v1110, 0.0
      %v1339 = vmax.f32 %v1115, 0.0
      %v1340 = vmax.f32 %v1118, 0.0
      %v1341 = vmax.f32 %v1123, 0.0
      %v1342 = vmax.f32 %v1126, 0.0
      %v1343 = vmax.f32 %v1131, 0.0
      %v1344 = vmax.f32 %v1134, 0.0
      %v1345 = vmax.f32 %v1139, 0.0
      %v1346 = vmax.f32 %v1142, 0.0
      %v1347 = vmax.f32 %v1147, 0.0
      %v1348 = vmax.f32 %v1150, 0.0
      %v1349 = vmax.f32 %v1155, 0.0
      %v1350 = vmax.f32 %v1158, 0.0
      %v1351 = vmax.f32 %v1163, 0.0
      %v1352 = vmax.f32 %v1166, 0.0
      %v1353 = vmax.f32 %v1171, 0.0
      %v1354 = vmax.f32 %v1174, 0.0
      %v1355 = vmax.f32 %v1179, 0.0
      %v1356 = vmax.f32 %v1182, 0.0
      %v1357 = vmax.f32 %v1187, 0.0
      %v1358 = vmax.f32 %v1190, 0.0
      %v1359 = vmax.f32 %v1195, 0.0
      %v1360 = vmax.f32 %v1198, 0.0
      %v1361 = vmax.f32 %v1203, 0.0
      %v1362 = vmax.f32 %v1206, 0.0
      %v1363 = vmax.f32 %v1211, 0.0
      %v1364 = vmax.f32 %v1214, 0.0
      %v1365 = vmax.f32 %v1219, 0.0
      %v1366 = vmax.f32 %v1222, 0.0
      %v1367 = vmax.f32 %v1227, 0.0
      %v1368 = vmax.f32 %v1230, 0.0
      %v1369 = vmax.f32 %v1235, 0.0
      %v1370 = vmax.f32 %v1238, 0.0
      %v1371 = vmax.f32 %v1243, 0.0
      %v1372 = vmax.f32 %v1246, 0.0
      %v1373 = vmax.f32 %v1251, 0.0
      %v1374 = vmax.f32 %v1254, 0.0
      %v1375 = vmax.f32 %v1259, 0.0
      %v1376 = vmax.f32 %v1262, 0.0
      %v1377 = vmax.f32 %v1267, 0.0
      %v1378 = vmax.f32 %v1270, 0.0
      %v1379 = vmax.f32 %v1275, 0.0
      %v1380 = vmax.f32 %v1278, 0.0
      %v1381 = vmax.f32 %v1283, 0.0
      %v1382 = vmax.f32 %v1286, 0.0
      %v1383 = vmax.f32 %v1291, 0.0
      %v1384 = vmax.f32 %v1294, 0.0
      %v1385 = vmax.f32 %v1299, 0.0
      %v1386 = vmax.f32 %v1302, 0.0
      %v1387 = vmax.f32 %v1307, 0.0
      %v1388 = vmax.f32 %v1310, 0.0
      %v1389 = vmax.f32 %v1315, 0.0
      %v1390 = vmax.f32 %v1318, 0.0
      %v1391 = vmax.f32 %v1323, 0.0
      %v1392 = vmax.f32 %v1326, 0.0
      %v1393 = vpack.c.bf16 %v1330, %v1329
      %v1394 = vpack.c.bf16 %v1332, %v1331
      %v1395 = vpack.c.bf16 %v1334, %v1333
      %v1396 = vpack.c.bf16 %v1336, %v1335
      %v1397 = vpack.c.bf16 %v1338, %v1337
      %v1398 = vpack.c.bf16 %v1340, %v1339
      %v1399 = vpack.c.bf16 %v1342, %v1341
      %v1400 = vpack.c.bf16 %v1344, %v1343
      %v1401 = vpack.c.bf16 %v1346, %v1345
      %v1402 = vpack.c.bf16 %v1348, %v1347
      %v1403 = vpack.c.bf16 %v1350, %v1349
      %v1404 = vpack.c.bf16 %v1352, %v1351
      %v1405 = vpack.c.bf16 %v1354, %v1353
      %v1406 = vpack.c.bf16 %v1356, %v1355
      %v1407 = vpack.c.bf16 %v1358, %v1357
      %v1408 = vpack.c.bf16 %v1360, %v1359
      %v1409 = vpack.c.bf16 %v1362, %v1361
      %v1410 = vpack.c.bf16 %v1364, %v1363
      %v1411 = vpack.c.bf16 %v1366, %v1365
      %v1412 = vpack.c.bf16 %v1368, %v1367
      %v1413 = vpack.c.bf16 %v1370, %v1369
      %v1414 = vpack.c.bf16 %v1372, %v1371
      %v1415 = vpack.c.bf16 %v1374, %v1373
      %v1416 = vpack.c.bf16 %v1376, %v1375
      %v1417 = vpack.c.bf16 %v1378, %v1377
      %v1418 = vpack.c.bf16 %v1380, %v1379
      %v1419 = vpack.c.bf16 %v1382, %v1381
      %v1420 = vpack.c.bf16 %v1384, %v1383
      %v1421 = vpack.c.bf16 %v1386, %v1385
      %v1422 = vpack.c.bf16 %v1388, %v1387
      %v1423 = vpack.c.bf16 %v1390, %v1389
      %v1424 = vpack.c.bf16 %v1392, %v1391
      %v1425 = vld [vmem:[%s3] sm:$0xf]
      %v1426 = vld [vmem:[%s3 + $0x4] sm:$0xf]
      %v1427 = vld [vmem:[%s3 + $0x8] sm:$0xf]
      %v1428 = vld [vmem:[%s3 + $0xc] sm:$0xf]
      %v1429 = vld [vmem:[%s3 + $0x10] sm:$0xf]
      %v1430 = vld [vmem:[%s3 + $0x14] sm:$0xf]
      %v1431 = vld [vmem:[%s3 + $0x18] sm:$0xf]
      %v1432 = vld [vmem:[%s3 + $0x1c] sm:$0xf]
      %v1433 = vld [vmem:[%s4] sm:$0x1]
      %v1435 = vlaneseq
      %v1436 = vshrl.u32 %v1435, 7
      %v1437 = vsub.s32 0, %v1436
      %v1438 = vrot.slane %v1433, %v1437
      %v1448 = vunpack.c.l.b16 %v1425
      %v1449 = vunpack.c.l.b16 %v1426
      %v1450 = vunpack.c.l.b16 %v1427
      %v1451 = vunpack.c.l.b16 %v1428
      %v1452 = vunpack.c.l.b16 %v1429
      %v1453 = vunpack.c.l.b16 %v1430
      %v1454 = vunpack.c.l.b16 %v1431
      %v1455 = vunpack.c.l.b16 %v1432
      %v1456 = vpack.c.b16 %v1449, %v1448
      %v1457 = vpack.c.b16 %v1451, %v1450
      %v1458 = vpack.c.b16 %v1453, %v1452
      %v1459 = vpack.c.b16 %v1455, %v1454
      %vm1464 = vcmask 523264
      %v1466 = vsel %vm1464, %v1393, 0
      %v1469 = vsel %vm1464, %v1394, 0
      %v1472 = vsel %vm1464, %v1395, 0
      %v1475 = vsel %vm1464, %v1396, 0
      %v1478 = vsel %vm1464, %v1397, 0
      %v1481 = vsel %vm1464, %v1398, 0
      %v1484 = vsel %vm1464, %v1399, 0
      %v1487 = vsel %vm1464, %v1400, 0
      %v1490 = vsel %vm1464, %v1401, 0
      %v1493 = vsel %vm1464, %v1402, 0
      %v1496 = vsel %vm1464, %v1403, 0
      %v1499 = vsel %vm1464, %v1404, 0
      %v1502 = vsel %vm1464, %v1405, 0
      %v1505 = vsel %vm1464, %v1406, 0
      %v1508 = vsel %vm1464, %v1407, 0
      %v1511 = vsel %vm1464, %v1408, 0
      %v1514 = vsel %vm1464, %v1409, 0
      %v1517 = vsel %vm1464, %v1410, 0
      %v1520 = vsel %vm1464, %v1411, 0
      %v1523 = vsel %vm1464, %v1412, 0
      %v1526 = vsel %vm1464, %v1413, 0
      %v1529 = vsel %vm1464, %v1414, 0
      %v1532 = vsel %vm1464, %v1415, 0
      %v1535 = vsel %vm1464, %v1416, 0
      %v1538 = vsel %vm1464, %v1417, 0
      %v1541 = vsel %vm1464, %v1418, 0
      %v1544 = vsel %vm1464, %v1419, 0
      %v1547 = vsel %vm1464, %v1420, 0
      %v1550 = vsel %vm1464, %v1421, 0
      %v1553 = vsel %vm1464, %v1422, 0
      %v1556 = vsel %vm1464, %v1423, 0
      %v1559 = vsel %vm1464, %v1424, 0
      %1561 = vmatprep.subr.bf16.mxu0 0
      %1562 = vmatpush1.bf16.msra.mxu0 %v1456
      %1563 = vmatprep.subr.bf16.mxu0 0
      %1564 = vmatpush1.bf16.msra.mxu0 %v1457
      %1565 = vmatprep.subr.bf16.mxu0 0
      %1566 = vmatpush1.bf16.msra.mxu0 %v1458
      %1567 = vmatprep.subr.bf16.mxu0 0
      %1568 = vmatpush1.bf16.msra.mxu0 %v1459
      %1569 = vmatprep.subr.bf16.mxu0 0
      %1570 = vmatpush1.bf16.msra.mxu0 0
      %1571 = vmatprep.subr.bf16.mxu0 0
      %1572 = vmatpush1.bf16.msra.mxu0 0
      %1573 = vmatprep.subr.bf16.mxu0 0
      %1574 = vmatpush1.bf16.msra.mxu0 0
      %1575 = vmatprep.subr.bf16.mxu0 0
      %1576 = vmatpush1.bf16.msra.mxu0 0
      %1577 = vmatprep.subr.bf16.mxu0 0
      %1578 = vmatpush1.bf16.msra.mxu0 0
      %1579 = vmatprep.subr.bf16.mxu0 0
      %1580 = vmatpush1.bf16.msra.mxu0 0
      %1581 = vmatprep.subr.bf16.mxu0 0
      %1582 = vmatpush1.bf16.msra.mxu0 0
      %1583 = vmatprep.subr.bf16.mxu0 0
      %1584 = vmatpush1.bf16.msra.mxu0 0
      %1585 = vmatprep.subr.bf16.mxu0 0
      %1586 = vmatpush1.bf16.msra.mxu0 0
      %1587 = vmatprep.subr.bf16.mxu0 0
      %1588 = vmatpush1.bf16.msra.mxu0 0
      %1589 = vmatprep.subr.bf16.mxu0 0
      %1590 = vmatpush1.bf16.msra.mxu0 0
      %1591 = vmatprep.subr.bf16.mxu0 0
      %1592 = vmatpush1.bf16.msra.mxu0 0
      %1593 = vmatprep.mubr.bf16.mxu0 0
      %1594 = vmatmul.mubr.bf16.gmra.mrb[0].mxu0 %v1466
      %v1595 = vpop.f32.mrb[0].mxu0
      %v1596 = vadd.f32 %v1438, %v1595
      %v1597 = vpop.f32.mrb[0].mxu0
      %v1598 = vpop.f32.mrb[0].mxu0
      %v1599 = vadd.f32 %v1438, %v1598
      %v1600 = vpop.f32.mrb[0].mxu0
      %1601 = vmatprep.mubr.bf16.mxu0 0
      %1602 = vmatmul.mubr.bf16.gmra.mrb[0].mxu0 %v1469
      %v1603 = vpop.f32.mrb[0].mxu0
      %v1604 = vadd.f32 %v1438, %v1603
      %v1605 = vpop.f32.mrb[0].mxu0
      %v1606 = vpop.f32.mrb[0].mxu0
      %v1607 = vadd.f32 %v1438, %v1606
      %v1608 = vpop.f32.mrb[0].mxu0
      %1609 = vmatprep.mubr.bf16.mxu0 0
      %1610 = vmatmul.mubr.bf16.gmra.mrb[0].mxu0 %v1472
      %v1611 = vpop.f32.mrb[0].mxu0
      %v1612 = vadd.f32 %v1438, %v1611
      %v1613 = vpop.f32.mrb[0].mxu0
      %v1614 = vpop.f32.mrb[0].mxu0
      %v1615 = vadd.f32 %v1438, %v1614
      %v1616 = vpop.f32.mrb[0].mxu0
      %1617 = vmatprep.mubr.bf16.mxu0 0
      %1618 = vmatmul.mubr.bf16.gmra.mrb[0].mxu0 %v1475
      %v1619 = vpop.f32.mrb[0].mxu0
      %v1620 = vadd.f32 %v1438, %v1619
      %v1621 = vpop.f32.mrb[0].mxu0
      %v1622 = vpop.f32.mrb[0].mxu0
      %v1623 = vadd.f32 %v1438, %v1622
      %v1624 = vpop.f32.mrb[0].mxu0
      %1625 = vmatprep.mubr.bf16.mxu0 0
      %1626 = vmatmul.mubr.bf16.gmra.mrb[0].mxu0 %v1478
      %v1627 = vpop.f32.mrb[0].mxu0
      %v1628 = vadd.f32 %v1438, %v1627
      %v1629 = vpop.f32.mrb[0].mxu0
      %v1630 = vpop.f32.mrb[0].mxu0
      %v1631 = vadd.f32 %v1438, %v1630
      %v1632 = vpop.f32.mrb[0].mxu0
      %1633 = vmatprep.mubr.bf16.mxu0 0
      %1634 = vmatmul.mubr.bf16.gmra.mrb[0].mxu0 %v1481
      %v1635 = vpop.f32.mrb[0].mxu0
      %v1636 = vadd.f32 %v1438, %v1635
      %v1637 = vpop.f32.mrb[0].mxu0
      %v1638 = vpop.f32.mrb[0].mxu0
      %v1639 = vadd.f32 %v1438, %v1638
      %v1640 = vpop.f32.mrb[0].mxu0
      %1641 = vmatprep.mubr.bf16.mxu0 0
      %1642 = vmatmul.mubr.bf16.gmra.mrb[0].mxu0 %v1484
      %v1643 = vpop.f32.mrb[0].mxu0
      %v1644 = vadd.f32 %v1438, %v1643
      %v1645 = vpop.f32.mrb[0].mxu0
      %v1646 = vpop.f32.mrb[0].mxu0
      %v1647 = vadd.f32 %v1438, %v1646
      %v1648 = vpop.f32.mrb[0].mxu0
      %1649 = vmatprep.mubr.bf16.mxu0 0
      %1650 = vmatmul.mubr.bf16.gmra.mrb[0].mxu0 %v1487
      %v1651 = vpop.f32.mrb[0].mxu0
      %v1652 = vadd.f32 %v1438, %v1651
      %v1653 = vpop.f32.mrb[0].mxu0
      %v1654 = vpop.f32.mrb[0].mxu0
      %v1655 = vadd.f32 %v1438, %v1654
      %v1656 = vpop.f32.mrb[0].mxu0
      %1657 = vmatprep.mubr.bf16.mxu0 0
      %1658 = vmatmul.mubr.bf16.gmra.mrb[0].mxu0 %v1490
      %v1659 = vpop.f32.mrb[0].mxu0
      %v1660 = vadd.f32 %v1438, %v1659
      %v1661 = vpop.f32.mrb[0].mxu0
      %v1662 = vpop.f32.mrb[0].mxu0
      %v1663 = vadd.f32 %v1438, %v1662
      %v1664 = vpop.f32.mrb[0].mxu0
      %1665 = vmatprep.mubr.bf16.mxu0 0
      %1666 = vmatmul.mubr.bf16.gmra.mrb[0].mxu0 %v1493
      %v1667 = vpop.f32.mrb[0].mxu0
      %v1668 = vadd.f32 %v1438, %v1667
      %v1669 = vpop.f32.mrb[0].mxu0
      %v1670 = vpop.f32.mrb[0].mxu0
      %v1671 = vadd.f32 %v1438, %v1670
      %v1672 = vpop.f32.mrb[0].mxu0
      %1673 = vmatprep.mubr.bf16.mxu0 0
      %1674 = vmatmul.mubr.bf16.gmra.mrb[0].mxu0 %v1496
      %v1675 = vpop.f32.mrb[0].mxu0
      %v1676 = vadd.f32 %v1438, %v1675
      %v1677 = vpop.f32.mrb[0].mxu0
      %v1678 = vpop.f32.mrb[0].mxu0
      %v1679 = vadd.f32 %v1438, %v1678
      %v1680 = vpop.f32.mrb[0].mxu0
      %1681 = vmatprep.mubr.bf16.mxu0 0
      %1682 = vmatmul.mubr.bf16.gmra.mrb[0].mxu0 %v1499
      %v1683 = vpop.f32.mrb[0].mxu0
      %v1684 = vadd.f32 %v1438, %v1683
      %v1685 = vpop.f32.mrb[0].mxu0
      %v1686 = vpop.f32.mrb[0].mxu0
      %v1687 = vadd.f32 %v1438, %v1686
      %v1688 = vpop.f32.mrb[0].mxu0
      %1689 = vmatprep.mubr.bf16.mxu0 0
      %1690 = vmatmul.mubr.bf16.gmra.mrb[0].mxu0 %v1502
      %v1691 = vpop.f32.mrb[0].mxu0
      %v1692 = vadd.f32 %v1438, %v1691
      %v1693 = vpop.f32.mrb[0].mxu0
      %v1694 = vpop.f32.mrb[0].mxu0
      %v1695 = vadd.f32 %v1438, %v1694
      %v1696 = vpop.f32.mrb[0].mxu0
      %1697 = vmatprep.mubr.bf16.mxu0 0
      %1698 = vmatmul.mubr.bf16.gmra.mrb[0].mxu0 %v1505
      %v1699 = vpop.f32.mrb[0].mxu0
      %v1700 = vadd.f32 %v1438, %v1699
      %v1701 = vpop.f32.mrb[0].mxu0
      %v1702 = vpop.f32.mrb[0].mxu0
      %v1703 = vadd.f32 %v1438, %v1702
      %v1704 = vpop.f32.mrb[0].mxu0
      %1705 = vmatprep.mubr.bf16.mxu0 0
      %1706 = vmatmul.mubr.bf16.gmra.mrb[0].mxu0 %v1508
      %v1707 = vpop.f32.mrb[0].mxu0
      %v1708 = vadd.f32 %v1438, %v1707
      %v1709 = vpop.f32.mrb[0].mxu0
      %v1710 = vpop.f32.mrb[0].mxu0
      %v1711 = vadd.f32 %v1438, %v1710
      %v1712 = vpop.f32.mrb[0].mxu0
      %1713 = vmatprep.mubr.bf16.mxu0 0
      %1714 = vmatmul.mubr.bf16.gmra.mrb[0].mxu0 %v1511
      %v1715 = vpop.f32.mrb[0].mxu0
      %v1716 = vadd.f32 %v1438, %v1715
      %v1717 = vpop.f32.mrb[0].mxu0
      %v1718 = vpop.f32.mrb[0].mxu0
      %v1719 = vadd.f32 %v1438, %v1718
      %v1720 = vpop.f32.mrb[0].mxu0
      %1721 = vmatprep.mubr.bf16.mxu0 0
      %1722 = vmatmul.mubr.bf16.gmra.mrb[0].mxu0 %v1514
      %v1723 = vpop.f32.mrb[0].mxu0
      %v1724 = vadd.f32 %v1438, %v1723
      %v1725 = vpop.f32.mrb[0].mxu0
      %v1726 = vpop.f32.mrb[0].mxu0
      %v1727 = vadd.f32 %v1438, %v1726
      %v1728 = vpop.f32.mrb[0].mxu0
      %1729 = vmatprep.mubr.bf16.mxu0 0
      %1730 = vmatmul.mubr.bf16.gmra.mrb[0].mxu0 %v1517
      %v1731 = vpop.f32.mrb[0].mxu0
      %v1732 = vadd.f32 %v1438, %v1731
      %v1733 = vpop.f32.mrb[0].mxu0
      %v1734 = vpop.f32.mrb[0].mxu0
      %v1735 = vadd.f32 %v1438, %v1734
      %v1736 = vpop.f32.mrb[0].mxu0
      %1737 = vmatprep.mubr.bf16.mxu0 0
      %1738 = vmatmul.mubr.bf16.gmra.mrb[0].mxu0 %v1520
      %v1739 = vpop.f32.mrb[0].mxu0
      %v1740 = vadd.f32 %v1438, %v1739
      %v1741 = vpop.f32.mrb[0].mxu0
      %v1742 = vpop.f32.mrb[0].mxu0
      %v1743 = vadd.f32 %v1438, %v1742
      %v1744 = vpop.f32.mrb[0].mxu0
      %1745 = vmatprep.mubr.bf16.mxu0 0
      %1746 = vmatmul.mubr.bf16.gmra.mrb[0].mxu0 %v1523
      %v1747 = vpop.f32.mrb[0].mxu0
      %v1748 = vadd.f32 %v1438, %v1747
      %v1749 = vpop.f32.mrb[0].mxu0
      %v1750 = vpop.f32.mrb[0].mxu0
      %v1751 = vadd.f32 %v1438, %v1750
      %v1752 = vpop.f32.mrb[0].mxu0
      %1753 = vmatprep.mubr.bf16.mxu0 0
      %1754 = vmatmul.mubr.bf16.gmra.mrb[0].mxu0 %v1526
      %v1755 = vpop.f32.mrb[0].mxu0
      %v1756 = vadd.f32 %v1438, %v1755
      %v1757 = vpop.f32.mrb[0].mxu0
      %v1758 = vpop.f32.mrb[0].mxu0
      %v1759 = vadd.f32 %v1438, %v1758
      %v1760 = vpop.f32.mrb[0].mxu0
      %1761 = vmatprep.mubr.bf16.mxu0 0
      %1762 = vmatmul.mubr.bf16.gmra.mrb[0].mxu0 %v1529
      %v1763 = vpop.f32.mrb[0].mxu0
      %v1764 = vadd.f32 %v1438, %v1763
      %v1765 = vpop.f32.mrb[0].mxu0
      %v1766 = vpop.f32.mrb[0].mxu0
      %v1767 = vadd.f32 %v1438, %v1766
      %v1768 = vpop.f32.mrb[0].mxu0
      %1769 = vmatprep.mubr.bf16.mxu0 0
      %1770 = vmatmul.mubr.bf16.gmra.mrb[0].mxu0 %v1532
      %v1771 = vpop.f32.mrb[0].mxu0
      %v1772 = vadd.f32 %v1438, %v1771
      %v1773 = vpop.f32.mrb[0].mxu0
      %v1774 = vpop.f32.mrb[0].mxu0
      %v1775 = vadd.f32 %v1438, %v1774
      %v1776 = vpop.f32.mrb[0].mxu0
      %1777 = vmatprep.mubr.bf16.mxu0 0
      %1778 = vmatmul.mubr.bf16.gmra.mrb[0].mxu0 %v1535
      %v1779 = vpop.f32.mrb[0].mxu0
      %v1780 = vadd.f32 %v1438, %v1779
      %v1781 = vpop.f32.mrb[0].mxu0
      %v1782 = vpop.f32.mrb[0].mxu0
      %v1783 = vadd.f32 %v1438, %v1782
      %v1784 = vpop.f32.mrb[0].mxu0
      %1785 = vmatprep.mubr.bf16.mxu0 0
      %1786 = vmatmul.mubr.bf16.gmra.mrb[0].mxu0 %v1538
      %v1787 = vpop.f32.mrb[0].mxu0
      %v1788 = vadd.f32 %v1438, %v1787
      %v1789 = vpop.f32.mrb[0].mxu0
      %v1790 = vpop.f32.mrb[0].mxu0
      %v1791 = vadd.f32 %v1438, %v1790
      %v1792 = vpop.f32.mrb[0].mxu0
      %1793 = vmatprep.mubr.bf16.mxu0 0
      %1794 = vmatmul.mubr.bf16.gmra.mrb[0].mxu0 %v1541
      %v1795 = vpop.f32.mrb[0].mxu0
      %v1796 = vadd.f32 %v1438, %v1795
      %v1797 = vpop.f32.mrb[0].mxu0
      %v1798 = vpop.f32.mrb[0].mxu0
      %v1799 = vadd.f32 %v1438, %v1798
      %v1800 = vpop.f32.mrb[0].mxu0
      %1801 = vmatprep.mubr.bf16.mxu0 0
      %1802 = vmatmul.mubr.bf16.gmra.mrb[0].mxu0 %v1544
      %v1803 = vpop.f32.mrb[0].mxu0
      %v1804 = vadd.f32 %v1438, %v1803
      %v1805 = vpop.f32.mrb[0].mxu0
      %v1806 = vpop.f32.mrb[0].mxu0
      %v1807 = vadd.f32 %v1438, %v1806
      %v1808 = vpop.f32.mrb[0].mxu0
      %1809 = vmatprep.mubr.bf16.mxu0 0
      %1810 = vmatmul.mubr.bf16.gmra.mrb[0].mxu0 %v1547
      %v1811 = vpop.f32.mrb[0].mxu0
      %v1812 = vadd.f32 %v1438, %v1811
      %v1813 = vpop.f32.mrb[0].mxu0
      %v1814 = vpop.f32.mrb[0].mxu0
      %v1815 = vadd.f32 %v1438, %v1814
      %v1816 = vpop.f32.mrb[0].mxu0
      %1817 = vmatprep.mubr.bf16.mxu0 0
      %1818 = vmatmul.mubr.bf16.gmra.mrb[0].mxu0 %v1550
      %v1819 = vpop.f32.mrb[0].mxu0
      %v1820 = vadd.f32 %v1438, %v1819
      %v1821 = vpop.f32.mrb[0].mxu0
      %v1822 = vpop.f32.mrb[0].mxu0
      %v1823 = vadd.f32 %v1438, %v1822
      %v1824 = vpop.f32.mrb[0].mxu0
      %1825 = vmatprep.mubr.bf16.mxu0 0
      %1826 = vmatmul.mubr.bf16.gmra.mrb[0].mxu0 %v1553
      %v1827 = vpop.f32.mrb[0].mxu0
      %v1828 = vadd.f32 %v1438, %v1827
      %v1829 = vpop.f32.mrb[0].mxu0
      %v1830 = vpop.f32.mrb[0].mxu0
      %v1831 = vadd.f32 %v1438, %v1830
      %v1832 = vpop.f32.mrb[0].mxu0
      %1833 = vmatprep.mubr.bf16.mxu0 0
      %1834 = vmatmul.mubr.bf16.gmra.mrb[0].mxu0 %v1556
      %v1835 = vpop.f32.mrb[0].mxu0
      %v1836 = vadd.f32 %v1438, %v1835
      %v1837 = vpop.f32.mrb[0].mxu0
      %v1838 = vpop.f32.mrb[0].mxu0
      %v1839 = vadd.f32 %v1438, %v1838
      %v1840 = vpop.f32.mrb[0].mxu0
      %1841 = vmatprep.mubr.bf16.mxu0 0
      %1842 = vmatmul.mubr.bf16.gmra.mrb[0].mxu0 %v1559
      %v1843 = vpop.f32.mrb[0].mxu0
      %v1844 = vadd.f32 %v1438, %v1843
      %v1845 = vpop.f32.mrb[0].mxu0
      %v1846 = vpop.f32.mrb[0].mxu0
      %v1847 = vadd.f32 %v1438, %v1846
      %v1848 = vpop.f32.mrb[0].mxu0
      %1849 = vdwg.mxu0
      %v1850 = vmax.f32 %v1596, 0.0
      %v1851 = vmax.f32 %v1599, 0.0
      %v1852 = vmax.f32 %v1604, 0.0
      %v1853 = vmax.f32 %v1607, 0.0
      %v1854 = vmax.f32 %v1612, 0.0
      %v1855 = vmax.f32 %v1615, 0.0
      %v1856 = vmax.f32 %v1620, 0.0
      %v1857 = vmax.f32 %v1623, 0.0
      %v1858 = vmax.f32 %v1628, 0.0
      %v1859 = vmax.f32 %v1631, 0.0
      %v1860 = vmax.f32 %v1636, 0.0
      %v1861 = vmax.f32 %v1639, 0.0
      %v1862 = vmax.f32 %v1644, 0.0
      %v1863 = vmax.f32 %v1647, 0.0
      %v1864 = vmax.f32 %v1652, 0.0
      %v1865 = vmax.f32 %v1655, 0.0
      %v1866 = vmax.f32 %v1660, 0.0
      %v1867 = vmax.f32 %v1663, 0.0
      %v1868 = vmax.f32 %v1668, 0.0
      %v1869 = vmax.f32 %v1671, 0.0
      %v1870 = vmax.f32 %v1676, 0.0
      %v1871 = vmax.f32 %v1679, 0.0
      %v1872 = vmax.f32 %v1684, 0.0
      %v1873 = vmax.f32 %v1687, 0.0
      %v1874 = vmax.f32 %v1692, 0.0
      %v1875 = vmax.f32 %v1695, 0.0
      %v1876 = vmax.f32 %v1700, 0.0
      %v1877 = vmax.f32 %v1703, 0.0
      %v1878 = vmax.f32 %v1708, 0.0
      %v1879 = vmax.f32 %v1711, 0.0
      %v1880 = vmax.f32 %v1716, 0.0
      %v1881 = vmax.f32 %v1719, 0.0
      %v1882 = vmax.f32 %v1724, 0.0
      %v1883 = vmax.f32 %v1727, 0.0
      %v1884 = vmax.f32 %v1732, 0.0
      %v1885 = vmax.f32 %v1735, 0.0
      %v1886 = vmax.f32 %v1740, 0.0
      %v1887 = vmax.f32 %v1743, 0.0
      %v1888 = vmax.f32 %v1748, 0.0
      %v1889 = vmax.f32 %v1751, 0.0
      %v1890 = vmax.f32 %v1756, 0.0
      %v1891 = vmax.f32 %v1759, 0.0
      %v1892 = vmax.f32 %v1764, 0.0
      %v1893 = vmax.f32 %v1767, 0.0
      %v1894 = vmax.f32 %v1772, 0.0
      %v1895 = vmax.f32 %v1775, 0.0
      %v1896 = vmax.f32 %v1780, 0.0
      %v1897 = vmax.f32 %v1783, 0.0
      %v1898 = vmax.f32 %v1788, 0.0
      %v1899 = vmax.f32 %v1791, 0.0
      %v1900 = vmax.f32 %v1796, 0.0
      %v1901 = vmax.f32 %v1799, 0.0
      %v1902 = vmax.f32 %v1804, 0.0
      %v1903 = vmax.f32 %v1807, 0.0
      %v1904 = vmax.f32 %v1812, 0.0
      %v1905 = vmax.f32 %v1815, 0.0
      %v1906 = vmax.f32 %v1820, 0.0
      %v1907 = vmax.f32 %v1823, 0.0
      %v1908 = vmax.f32 %v1828, 0.0
      %v1909 = vmax.f32 %v1831, 0.0
      %v1910 = vmax.f32 %v1836, 0.0
      %v1911 = vmax.f32 %v1839, 0.0
      %v1912 = vmax.f32 %v1844, 0.0
      %v1913 = vmax.f32 %v1847, 0.0
      %v1914 = vld [vmem:[%s5] sm:$0x1]
      %v1916 = vlaneseq
      %v1917 = vshrl.u32 %v1916, 7
      %v1918 = vsub.s32 0, %v1917
      %v1919 = vrot.slane %v1914, %v1918
      %v1921 = vmul.f32 %v696, %v1919
      %v1922 = vmul.f32 %v697, %v1919
      %v1923 = vmul.f32 %v698, %v1919
      %v1924 = vmul.f32 %v699, %v1919
      %v1925 = vmul.f32 %v700, %v1919
      %v1926 = vmul.f32 %v701, %v1919
      %v1927 = vmul.f32 %v702, %v1919
      %v1928 = vmul.f32 %v703, %v1919
      %v1929 = vmul.f32 %v704, %v1919
      %v1930 = vmul.f32 %v705, %v1919
      %v1931 = vmul.f32 %v706, %v1919
      %v1932 = vmul.f32 %v707, %v1919
      %v1933 = vmul.f32 %v708, %v1919
      %v1934 = vmul.f32 %v709, %v1919
      %v1935 = vmul.f32 %v710, %v1919
      %v1936 = vmul.f32 %v711, %v1919
      %v1937 = vmul.f32 %v712, %v1919
      %v1938 = vmul.f32 %v713, %v1919
      %v1939 = vmul.f32 %v714, %v1919
      %v1940 = vmul.f32 %v715, %v1919
      %v1941 = vmul.f32 %v716, %v1919
      %v1942 = vmul.f32 %v717, %v1919
      %v1943 = vmul.f32 %v718, %v1919
      %v1944 = vmul.f32 %v719, %v1919
      %v1945 = vmul.f32 %v720, %v1919
      %v1946 = vmul.f32 %v721, %v1919
      %v1947 = vmul.f32 %v722, %v1919
      %v1948 = vmul.f32 %v723, %v1919
      %v1949 = vmul.f32 %v724, %v1919
      %v1950 = vmul.f32 %v725, %v1919
      %v1951 = vmul.f32 %v726, %v1919
      %v1952 = vmul.f32 %v727, %v1919
      %v1953 = vmul.f32 %v728, %v1919
      %v1954 = vmul.f32 %v729, %v1919
      %v1955 = vmul.f32 %v730, %v1919
      %v1956 = vmul.f32 %v731, %v1919
      %v1957 = vmul.f32 %v732, %v1919
      %v1958 = vmul.f32 %v733, %v1919
      %v1959 = vmul.f32 %v734, %v1919
      %v1960 = vmul.f32 %v735, %v1919
      %v1961 = vmul.f32 %v736, %v1919
      %v1962 = vmul.f32 %v737, %v1919
      %v1963 = vmul.f32 %v738, %v1919
      %v1964 = vmul.f32 %v739, %v1919
      %v1965 = vmul.f32 %v740, %v1919
      %v1966 = vmul.f32 %v741, %v1919
      %v1967 = vmul.f32 %v742, %v1919
      %v1968 = vmul.f32 %v743, %v1919
      %v1969 = vmul.f32 %v744, %v1919
      %v1970 = vmul.f32 %v745, %v1919
      %v1971 = vmul.f32 %v746, %v1919
      %v1972 = vmul.f32 %v747, %v1919
      %v1973 = vmul.f32 %v748, %v1919
      %v1974 = vmul.f32 %v749, %v1919
      %v1975 = vmul.f32 %v750, %v1919
      %v1976 = vmul.f32 %v751, %v1919
      %v1977 = vmul.f32 %v752, %v1919
      %v1978 = vmul.f32 %v753, %v1919
      %v1979 = vmul.f32 %v754, %v1919
      %v1980 = vmul.f32 %v755, %v1919
      %v1981 = vmul.f32 %v756, %v1919
      %v1982 = vmul.f32 %v757, %v1919
      %v1983 = vmul.f32 %v758, %v1919
      %v1984 = vmul.f32 %v759, %v1919
      %vm1985 = vcmask 130048
      %v1986 = vsel %vm1985, %v1921, 0.0
      %1987 = vadd.xlane.f32.xlu0 %v1986
      %v1988 = vpop.xlane.xlu0 %1987
      %v1989 = vsel %vm1985, %v1922, 0.0
      %1990 = vadd.xlane.f32.xlu0 %v1989
      %v1991 = vpop.xlane.xlu0 %1990
      %v1992 = vsel %vm1985, %v1923, 0.0
      %1993 = vadd.xlane.f32.xlu0 %v1992
      %v1994 = vpop.xlane.xlu0 %1993
      %v1995 = vsel %vm1985, %v1924, 0.0
      %1996 = vadd.xlane.f32.xlu0 %v1995
      %v1997 = vpop.xlane.xlu0 %1996
      %v1998 = vsel %vm1985, %v1925, 0.0
      %1999 = vadd.xlane.f32.xlu0 %v1998
      %v2000 = vpop.xlane.xlu0 %1999
      %v2001 = vsel %vm1985, %v1926, 0.0
      %2002 = vadd.xlane.f32.xlu0 %v2001
      %v2003 = vpop.xlane.xlu0 %2002
      %v2004 = vsel %vm1985, %v1927, 0.0
      %2005 = vadd.xlane.f32.xlu0 %v2004
      %v2006 = vpop.xlane.xlu0 %2005
      %v2007 = vsel %vm1985, %v1928, 0.0
      %2008 = vadd.xlane.f32.xlu0 %v2007
      %v2009 = vpop.xlane.xlu0 %2008
      %v2010 = vsel %vm1985, %v1929, 0.0
      %2011 = vadd.xlane.f32.xlu0 %v2010
      %v2012 = vpop.xlane.xlu0 %2011
      %v2013 = vsel %vm1985, %v1930, 0.0
      %2014 = vadd.xlane.f32.xlu0 %v2013
      %v2015 = vpop.xlane.xlu0 %2014
      %v2016 = vsel %vm1985, %v1931, 0.0
      %2017 = vadd.xlane.f32.xlu0 %v2016
      %v2018 = vpop.xlane.xlu0 %2017
      %v2019 = vsel %vm1985, %v1932, 0.0
      %2020 = vadd.xlane.f32.xlu0 %v2019
      %v2021 = vpop.xlane.xlu0 %2020
      %v2022 = vsel %vm1985, %v1933, 0.0
      %2023 = vadd.xlane.f32.xlu0 %v2022
      %v2024 = vpop.xlane.xlu0 %2023
      %v2025 = vsel %vm1985, %v1934, 0.0
      %2026 = vadd.xlane.f32.xlu0 %v2025
      %v2027 = vpop.xlane.xlu0 %2026
      %v2028 = vsel %vm1985, %v1935, 0.0
      %2029 = vadd.xlane.f32.xlu0 %v2028
      %v2030 = vpop.xlane.xlu0 %2029
      %v2031 = vsel %vm1985, %v1936, 0.0
      %2032 = vadd.xlane.f32.xlu0 %v2031
      %v2033 = vpop.xlane.xlu0 %2032
      %v2034 = vsel %vm1985, %v1937, 0.0
      %2035 = vadd.xlane.f32.xlu0 %v2034
      %v2036 = vpop.xlane.xlu0 %2035
      %v2037 = vsel %vm1985, %v1938, 0.0
      %2038 = vadd.xlane.f32.xlu0 %v2037
      %v2039 = vpop.xlane.xlu0 %2038
      %v2040 = vsel %vm1985, %v1939, 0.0
      %2041 = vadd.xlane.f32.xlu0 %v2040
      %v2042 = vpop.xlane.xlu0 %2041
      %v2043 = vsel %vm1985, %v1940, 0.0
      %2044 = vadd.xlane.f32.xlu0 %v2043
      %v2045 = vpop.xlane.xlu0 %2044
      %v2046 = vsel %vm1985, %v1941, 0.0
      %2047 = vadd.xlane.f32.xlu0 %v2046
      %v2048 = vpop.xlane.xlu0 %2047
      %v2049 = vsel %vm1985, %v1942, 0.0
      %2050 = vadd.xlane.f32.xlu0 %v2049
      %v2051 = vpop.xlane.xlu0 %2050
      %v2052 = vsel %vm1985, %v1943, 0.0
      %2053 = vadd.xlane.f32.xlu0 %v2052
      %v2054 = vpop.xlane.xlu0 %2053
      %v2055 = vsel %vm1985, %v1944, 0.0
      %2056 = vadd.xlane.f32.xlu0 %v2055
      %v2057 = vpop.xlane.xlu0 %2056
      %v2058 = vsel %vm1985, %v1945, 0.0
      %2059 = vadd.xlane.f32.xlu0 %v2058
      %v2060 = vpop.xlane.xlu0 %2059
      %v2061 = vsel %vm1985, %v1946, 0.0
      %2062 = vadd.xlane.f32.xlu0 %v2061
      %v2063 = vpop.xlane.xlu0 %2062
      %v2064 = vsel %vm1985, %v1947, 0.0
      %2065 = vadd.xlane.f32.xlu0 %v2064
      %v2066 = vpop.xlane.xlu0 %2065
      %v2067 = vsel %vm1985, %v1948, 0.0
      %2068 = vadd.xlane.f32.xlu0 %v2067
      %v2069 = vpop.xlane.xlu0 %2068
      %v2070 = vsel %vm1985, %v1949, 0.0
      %2071 = vadd.xlane.f32.xlu0 %v2070
      %v2072 = vpop.xlane.xlu0 %2071
      %v2073 = vsel %vm1985, %v1950, 0.0
      %2074 = vadd.xlane.f32.xlu0 %v2073
      %v2075 = vpop.xlane.xlu0 %2074
      %v2076 = vsel %vm1985, %v1951, 0.0
      %2077 = vadd.xlane.f32.xlu0 %v2076
      %v2078 = vpop.xlane.xlu0 %2077
      %v2079 = vsel %vm1985, %v1952, 0.0
      %2080 = vadd.xlane.f32.xlu0 %v2079
      %v2081 = vpop.xlane.xlu0 %2080
      %v2082 = vsel %vm1985, %v1953, 0.0
      %2083 = vadd.xlane.f32.xlu0 %v2082
      %v2084 = vpop.xlane.xlu0 %2083
      %v2085 = vsel %vm1985, %v1954, 0.0
      %2086 = vadd.xlane.f32.xlu0 %v2085
      %v2087 = vpop.xlane.xlu0 %2086
      %v2088 = vsel %vm1985, %v1955, 0.0
      %2089 = vadd.xlane.f32.xlu0 %v2088
      %v2090 = vpop.xlane.xlu0 %2089
      %v2091 = vsel %vm1985, %v1956, 0.0
      %2092 = vadd.xlane.f32.xlu0 %v2091
      %v2093 = vpop.xlane.xlu0 %2092
      %v2094 = vsel %vm1985, %v1957, 0.0
      %2095 = vadd.xlane.f32.xlu0 %v2094
      %v2096 = vpop.xlane.xlu0 %2095
      %v2097 = vsel %vm1985, %v1958, 0.0
      %2098 = vadd.xlane.f32.xlu0 %v2097
      %v2099 = vpop.xlane.xlu0 %2098
      %v2100 = vsel %vm1985, %v1959, 0.0
      %2101 = vadd.xlane.f32.xlu0 %v2100
      %v2102 = vpop.xlane.xlu0 %2101
      %v2103 = vsel %vm1985, %v1960, 0.0
      %2104 = vadd.xlane.f32.xlu0 %v2103
      %v2105 = vpop.xlane.xlu0 %2104
      %v2106 = vsel %vm1985, %v1961, 0.0
      %2107 = vadd.xlane.f32.xlu0 %v2106
      %v2108 = vpop.xlane.xlu0 %2107
      %v2109 = vsel %vm1985, %v1962, 0.0
      %2110 = vadd.xlane.f32.xlu0 %v2109
      %v2111 = vpop.xlane.xlu0 %2110
      %v2112 = vsel %vm1985, %v1963, 0.0
      %2113 = vadd.xlane.f32.xlu0 %v2112
      %v2114 = vpop.xlane.xlu0 %2113
      %v2115 = vsel %vm1985, %v1964, 0.0
      %2116 = vadd.xlane.f32.xlu0 %v2115
      %v2117 = vpop.xlane.xlu0 %2116
      %v2118 = vsel %vm1985, %v1965, 0.0
      %2119 = vadd.xlane.f32.xlu0 %v2118
      %v2120 = vpop.xlane.xlu0 %2119
      %v2121 = vsel %vm1985, %v1966, 0.0
      %2122 = vadd.xlane.f32.xlu0 %v2121
      %v2123 = vpop.xlane.xlu0 %2122
      %v2124 = vsel %vm1985, %v1967, 0.0
      %2125 = vadd.xlane.f32.xlu0 %v2124
      %v2126 = vpop.xlane.xlu0 %2125
      %v2127 = vsel %vm1985, %v1968, 0.0
      %2128 = vadd.xlane.f32.xlu0 %v2127
      %v2129 = vpop.xlane.xlu0 %2128
      %v2130 = vsel %vm1985, %v1969, 0.0
      %2131 = vadd.xlane.f32.xlu0 %v2130
      %v2132 = vpop.xlane.xlu0 %2131
      %v2133 = vsel %vm1985, %v1970, 0.0
      %2134 = vadd.xlane.f32.xlu0 %v2133
      %v2135 = vpop.xlane.xlu0 %2134
      %v2136 = vsel %vm1985, %v1971, 0.0
      %2137 = vadd.xlane.f32.xlu0 %v2136
      %v2138 = vpop.xlane.xlu0 %2137
      %v2139 = vsel %vm1985, %v1972, 0.0
      %2140 = vadd.xlane.f32.xlu0 %v2139
      %v2141 = vpop.xlane.xlu0 %2140
      %v2142 = vsel %vm1985, %v1973, 0.0
      %2143 = vadd.xlane.f32.xlu0 %v2142
      %v2144 = vpop.xlane.xlu0 %2143
      %v2145 = vsel %vm1985, %v1974, 0.0
      %2146 = vadd.xlane.f32.xlu0 %v2145
      %v2147 = vpop.xlane.xlu0 %2146
      %v2148 = vsel %vm1985, %v1975, 0.0
      %2149 = vadd.xlane.f32.xlu0 %v2148
      %v2150 = vpop.xlane.xlu0 %2149
      %v2151 = vsel %vm1985, %v1976, 0.0
      %2152 = vadd.xlane.f32.xlu0 %v2151
      %v2153 = vpop.xlane.xlu0 %2152
      %v2154 = vsel %vm1985, %v1977, 0.0
      %2155 = vadd.xlane.f32.xlu0 %v2154
      %v2156 = vpop.xlane.xlu0 %2155
      %v2157 = vsel %vm1985, %v1978, 0.0
      %2158 = vadd.xlane.f32.xlu0 %v2157
      %v2159 = vpop.xlane.xlu0 %2158
      %v2160 = vsel %vm1985, %v1979, 0.0
      %2161 = vadd.xlane.f32.xlu0 %v2160
      %v2162 = vpop.xlane.xlu0 %2161
      %v2163 = vsel %vm1985, %v1980, 0.0
      %2164 = vadd.xlane.f32.xlu0 %v2163
      %v2165 = vpop.xlane.xlu0 %2164
      %v2166 = vsel %vm1985, %v1981, 0.0
      %2167 = vadd.xlane.f32.xlu0 %v2166
      %v2168 = vpop.xlane.xlu0 %2167
      %v2169 = vsel %vm1985, %v1982, 0.0
      %2170 = vadd.xlane.f32.xlu0 %v2169
      %v2171 = vpop.xlane.xlu0 %2170
      %v2172 = vsel %vm1985, %v1983, 0.0
      %2173 = vadd.xlane.f32.xlu0 %v2172
      %v2174 = vpop.xlane.xlu0 %2173
      %v2175 = vsel %vm1985, %v1984, 0.0
      %2176 = vadd.xlane.f32.xlu0 %v2175
      %v2177 = vpop.xlane.xlu0 %2176
      %v2178 = vld [vmem:[%s6] sm:$0x1]
      %v2180 = vlaneseq
      %v2181 = vshrl.u32 %v2180, 7
      %v2182 = vsub.s32 0, %v2181
      %v2183 = vrot.slane %v2178, %v2182
      %v2185 = vmul.f32 %v1850, %v2183
      %v2186 = vmul.f32 %v1851, %v2183
      %v2187 = vmul.f32 %v1852, %v2183
      %v2188 = vmul.f32 %v1853, %v2183
      %v2189 = vmul.f32 %v1854, %v2183
      %v2190 = vmul.f32 %v1855, %v2183
      %v2191 = vmul.f32 %v1856, %v2183
      %v2192 = vmul.f32 %v1857, %v2183
      %v2193 = vmul.f32 %v1858, %v2183
      %v2194 = vmul.f32 %v1859, %v2183
      %v2195 = vmul.f32 %v1860, %v2183
      %v2196 = vmul.f32 %v1861, %v2183
      %v2197 = vmul.f32 %v1862, %v2183
      %v2198 = vmul.f32 %v1863, %v2183
      %v2199 = vmul.f32 %v1864, %v2183
      %v2200 = vmul.f32 %v1865, %v2183
      %v2201 = vmul.f32 %v1866, %v2183
      %v2202 = vmul.f32 %v1867, %v2183
      %v2203 = vmul.f32 %v1868, %v2183
      %v2204 = vmul.f32 %v1869, %v2183
      %v2205 = vmul.f32 %v1870, %v2183
      %v2206 = vmul.f32 %v1871, %v2183
      %v2207 = vmul.f32 %v1872, %v2183
      %v2208 = vmul.f32 %v1873, %v2183
      %v2209 = vmul.f32 %v1874, %v2183
      %v2210 = vmul.f32 %v1875, %v2183
      %v2211 = vmul.f32 %v1876, %v2183
      %v2212 = vmul.f32 %v1877, %v2183
      %v2213 = vmul.f32 %v1878, %v2183
      %v2214 = vmul.f32 %v1879, %v2183
      %v2215 = vmul.f32 %v1880, %v2183
      %v2216 = vmul.f32 %v1881, %v2183
      %v2217 = vmul.f32 %v1882, %v2183
      %v2218 = vmul.f32 %v1883, %v2183
      %v2219 = vmul.f32 %v1884, %v2183
      %v2220 = vmul.f32 %v1885, %v2183
      %v2221 = vmul.f32 %v1886, %v2183
      %v2222 = vmul.f32 %v1887, %v2183
      %v2223 = vmul.f32 %v1888, %v2183
      %v2224 = vmul.f32 %v1889, %v2183
      %v2225 = vmul.f32 %v1890, %v2183
      %v2226 = vmul.f32 %v1891, %v2183
      %v2227 = vmul.f32 %v1892, %v2183
      %v2228 = vmul.f32 %v1893, %v2183
      %v2229 = vmul.f32 %v1894, %v2183
      %v2230 = vmul.f32 %v1895, %v2183
      %v2231 = vmul.f32 %v1896, %v2183
      %v2232 = vmul.f32 %v1897, %v2183
      %v2233 = vmul.f32 %v1898, %v2183
      %v2234 = vmul.f32 %v1899, %v2183
      %v2235 = vmul.f32 %v1900, %v2183
      %v2236 = vmul.f32 %v1901, %v2183
      %v2237 = vmul.f32 %v1902, %v2183
      %v2238 = vmul.f32 %v1903, %v2183
      %v2239 = vmul.f32 %v1904, %v2183
      %v2240 = vmul.f32 %v1905, %v2183
      %v2241 = vmul.f32 %v1906, %v2183
      %v2242 = vmul.f32 %v1907, %v2183
      %v2243 = vmul.f32 %v1908, %v2183
      %v2244 = vmul.f32 %v1909, %v2183
      %v2245 = vmul.f32 %v1910, %v2183
      %v2246 = vmul.f32 %v1911, %v2183
      %v2247 = vmul.f32 %v1912, %v2183
      %v2248 = vmul.f32 %v1913, %v2183
      %v2249 = vsel %vm943, %v2185, 0.0
      %2250 = vadd.xlane.f32.xlu0 %v2249
      %v2251 = vpop.xlane.xlu0 %2250
      %v2252 = vsel %vm943, %v2186, 0.0
      %2253 = vadd.xlane.f32.xlu0 %v2252
      %v2254 = vpop.xlane.xlu0 %2253
      %v2255 = vsel %vm943, %v2187, 0.0
      %2256 = vadd.xlane.f32.xlu0 %v2255
      %v2257 = vpop.xlane.xlu0 %2256
      %v2258 = vsel %vm943, %v2188, 0.0
      %2259 = vadd.xlane.f32.xlu0 %v2258
      %v2260 = vpop.xlane.xlu0 %2259
      %v2261 = vsel %vm943, %v2189, 0.0
      %2262 = vadd.xlane.f32.xlu0 %v2261
      %v2263 = vpop.xlane.xlu0 %2262
      %v2264 = vsel %vm943, %v2190, 0.0
      %2265 = vadd.xlane.f32.xlu0 %v2264
      %v2266 = vpop.xlane.xlu0 %2265
      %v2267 = vsel %vm943, %v2191, 0.0
      %2268 = vadd.xlane.f32.xlu0 %v2267
      %v2269 = vpop.xlane.xlu0 %2268
      %v2270 = vsel %vm943, %v2192, 0.0
      %2271 = vadd.xlane.f32.xlu0 %v2270
      %v2272 = vpop.xlane.xlu0 %2271
      %v2273 = vsel %vm943, %v2193, 0.0
      %2274 = vadd.xlane.f32.xlu0 %v2273
      %v2275 = vpop.xlane.xlu0 %2274
      %v2276 = vsel %vm943, %v2194, 0.0
      %2277 = vadd.xlane.f32.xlu0 %v2276
      %v2278 = vpop.xlane.xlu0 %2277
      %v2279 = vsel %vm943, %v2195, 0.0
      %2280 = vadd.xlane.f32.xlu0 %v2279
      %v2281 = vpop.xlane.xlu0 %2280
      %v2282 = vsel %vm943, %v2196, 0.0
      %2283 = vadd.xlane.f32.xlu0 %v2282
      %v2284 = vpop.xlane.xlu0 %2283
      %v2285 = vsel %vm943, %v2197, 0.0
      %2286 = vadd.xlane.f32.xlu0 %v2285
      %v2287 = vpop.xlane.xlu0 %2286
      %v2288 = vsel %vm943, %v2198, 0.0
      %2289 = vadd.xlane.f32.xlu0 %v2288
      %v2290 = vpop.xlane.xlu0 %2289
      %v2291 = vsel %vm943, %v2199, 0.0
      %2292 = vadd.xlane.f32.xlu0 %v2291
      %v2293 = vpop.xlane.xlu0 %2292
      %v2294 = vsel %vm943, %v2200, 0.0
      %2295 = vadd.xlane.f32.xlu0 %v2294
      %v2296 = vpop.xlane.xlu0 %2295
      %v2297 = vsel %vm943, %v2201, 0.0
      %2298 = vadd.xlane.f32.xlu0 %v2297
      %v2299 = vpop.xlane.xlu0 %2298
      %v2300 = vsel %vm943, %v2202, 0.0
      %2301 = vadd.xlane.f32.xlu0 %v2300
      %v2302 = vpop.xlane.xlu0 %2301
      %v2303 = vsel %vm943, %v2203, 0.0
      %2304 = vadd.xlane.f32.xlu0 %v2303
      %v2305 = vpop.xlane.xlu0 %2304
      %v2306 = vsel %vm943, %v2204, 0.0
      %2307 = vadd.xlane.f32.xlu0 %v2306
      %v2308 = vpop.xlane.xlu0 %2307
      %v2309 = vsel %vm943, %v2205, 0.0
      %2310 = vadd.xlane.f32.xlu0 %v2309
      %v2311 = vpop.xlane.xlu0 %2310
      %v2312 = vsel %vm943, %v2206, 0.0
      %2313 = vadd.xlane.f32.xlu0 %v2312
      %v2314 = vpop.xlane.xlu0 %2313
      %v2315 = vsel %vm943, %v2207, 0.0
      %2316 = vadd.xlane.f32.xlu0 %v2315
      %v2317 = vpop.xlane.xlu0 %2316
      %v2318 = vsel %vm943, %v2208, 0.0
      %2319 = vadd.xlane.f32.xlu0 %v2318
      %v2320 = vpop.xlane.xlu0 %2319
      %v2321 = vsel %vm943, %v2209, 0.0
      %2322 = vadd.xlane.f32.xlu0 %v2321
      %v2323 = vpop.xlane.xlu0 %2322
      %v2324 = vsel %vm943, %v2210, 0.0
      %2325 = vadd.xlane.f32.xlu0 %v2324
      %v2326 = vpop.xlane.xlu0 %2325
      %v2327 = vsel %vm943, %v2211, 0.0
      %2328 = vadd.xlane.f32.xlu0 %v2327
      %v2329 = vpop.xlane.xlu0 %2328
      %v2330 = vsel %vm943, %v2212, 0.0
      %2331 = vadd.xlane.f32.xlu0 %v2330
      %v2332 = vpop.xlane.xlu0 %2331
      %v2333 = vsel %vm943, %v2213, 0.0
      %2334 = vadd.xlane.f32.xlu0 %v2333
      %v2335 = vpop.xlane.xlu0 %2334
      %v2336 = vsel %vm943, %v2214, 0.0
      %2337 = vadd.xlane.f32.xlu0 %v2336
      %v2338 = vpop.xlane.xlu0 %2337
      %v2339 = vsel %vm943, %v2215, 0.0
      %2340 = vadd.xlane.f32.xlu0 %v2339
      %v2341 = vpop.xlane.xlu0 %2340
      %v2342 = vsel %vm943, %v2216, 0.0
      %2343 = vadd.xlane.f32.xlu0 %v2342
      %v2344 = vpop.xlane.xlu0 %2343
      %v2345 = vsel %vm943, %v2217, 0.0
      %2346 = vadd.xlane.f32.xlu0 %v2345
      %v2347 = vpop.xlane.xlu0 %2346
      %v2348 = vsel %vm943, %v2218, 0.0
      %2349 = vadd.xlane.f32.xlu0 %v2348
      %v2350 = vpop.xlane.xlu0 %2349
      %v2351 = vsel %vm943, %v2219, 0.0
      %2352 = vadd.xlane.f32.xlu0 %v2351
      %v2353 = vpop.xlane.xlu0 %2352
      %v2354 = vsel %vm943, %v2220, 0.0
      %2355 = vadd.xlane.f32.xlu0 %v2354
      %v2356 = vpop.xlane.xlu0 %2355
      %v2357 = vsel %vm943, %v2221, 0.0
      %2358 = vadd.xlane.f32.xlu0 %v2357
      %v2359 = vpop.xlane.xlu0 %2358
      %v2360 = vsel %vm943, %v2222, 0.0
      %2361 = vadd.xlane.f32.xlu0 %v2360
      %v2362 = vpop.xlane.xlu0 %2361
      %v2363 = vsel %vm943, %v2223, 0.0
      %2364 = vadd.xlane.f32.xlu0 %v2363
      %v2365 = vpop.xlane.xlu0 %2364
      %v2366 = vsel %vm943, %v2224, 0.0
      %2367 = vadd.xlane.f32.xlu0 %v2366
      %v2368 = vpop.xlane.xlu0 %2367
      %v2369 = vsel %vm943, %v2225, 0.0
      %2370 = vadd.xlane.f32.xlu0 %v2369
      %v2371 = vpop.xlane.xlu0 %2370
      %v2372 = vsel %vm943, %v2226, 0.0
      %2373 = vadd.xlane.f32.xlu0 %v2372
      %v2374 = vpop.xlane.xlu0 %2373
      %v2375 = vsel %vm943, %v2227, 0.0
      %2376 = vadd.xlane.f32.xlu0 %v2375
      %v2377 = vpop.xlane.xlu0 %2376
      %v2378 = vsel %vm943, %v2228, 0.0
      %2379 = vadd.xlane.f32.xlu0 %v2378
      %v2380 = vpop.xlane.xlu0 %2379
      %v2381 = vsel %vm943, %v2229, 0.0
      %2382 = vadd.xlane.f32.xlu0 %v2381
      %v2383 = vpop.xlane.xlu0 %2382
      %v2384 = vsel %vm943, %v2230, 0.0
      %2385 = vadd.xlane.f32.xlu0 %v2384
      %v2386 = vpop.xlane.xlu0 %2385
      %v2387 = vsel %vm943, %v2231, 0.0
      %2388 = vadd.xlane.f32.xlu0 %v2387
      %v2389 = vpop.xlane.xlu0 %2388
      %v2390 = vsel %vm943, %v2232, 0.0
      %2391 = vadd.xlane.f32.xlu0 %v2390
      %v2392 = vpop.xlane.xlu0 %2391
      %v2393 = vsel %vm943, %v2233, 0.0
      %2394 = vadd.xlane.f32.xlu0 %v2393
      %v2395 = vpop.xlane.xlu0 %2394
      %v2396 = vsel %vm943, %v2234, 0.0
      %2397 = vadd.xlane.f32.xlu0 %v2396
      %v2398 = vpop.xlane.xlu0 %2397
      %v2399 = vsel %vm943, %v2235, 0.0
      %2400 = vadd.xlane.f32.xlu0 %v2399
      %v2401 = vpop.xlane.xlu0 %2400
      %v2402 = vsel %vm943, %v2236, 0.0
      %2403 = vadd.xlane.f32.xlu0 %v2402
      %v2404 = vpop.xlane.xlu0 %2403
      %v2405 = vsel %vm943, %v2237, 0.0
      %2406 = vadd.xlane.f32.xlu0 %v2405
      %v2407 = vpop.xlane.xlu0 %2406
      %v2408 = vsel %vm943, %v2238, 0.0
      %2409 = vadd.xlane.f32.xlu0 %v2408
      %v2410 = vpop.xlane.xlu0 %2409
      %v2411 = vsel %vm943, %v2239, 0.0
      %2412 = vadd.xlane.f32.xlu0 %v2411
      %v2413 = vpop.xlane.xlu0 %2412
      %v2414 = vsel %vm943, %v2240, 0.0
      %2415 = vadd.xlane.f32.xlu0 %v2414
      %v2416 = vpop.xlane.xlu0 %2415
      %v2417 = vsel %vm943, %v2241, 0.0
      %2418 = vadd.xlane.f32.xlu0 %v2417
      %v2419 = vpop.xlane.xlu0 %2418
      %v2420 = vsel %vm943, %v2242, 0.0
      %2421 = vadd.xlane.f32.xlu0 %v2420
      %v2422 = vpop.xlane.xlu0 %2421
      %v2423 = vsel %vm943, %v2243, 0.0
      %2424 = vadd.xlane.f32.xlu0 %v2423
      %v2425 = vpop.xlane.xlu0 %2424
      %v2426 = vsel %vm943, %v2244, 0.0
      %2427 = vadd.xlane.f32.xlu0 %v2426
      %v2428 = vpop.xlane.xlu0 %2427
      %v2429 = vsel %vm943, %v2245, 0.0
      %2430 = vadd.xlane.f32.xlu0 %v2429
      %v2431 = vpop.xlane.xlu0 %2430
      %v2432 = vsel %vm943, %v2246, 0.0
      %2433 = vadd.xlane.f32.xlu0 %v2432
      %v2434 = vpop.xlane.xlu0 %2433
      %v2435 = vsel %vm943, %v2247, 0.0
      %2436 = vadd.xlane.f32.xlu0 %v2435
      %v2437 = vpop.xlane.xlu0 %2436
      %v2438 = vsel %vm943, %v2248, 0.0
      %2439 = vadd.xlane.f32.xlu0 %v2438
      %v2440 = vpop.xlane.xlu0 %2439
      %v2441 = vadd.f32 %v1988, %v2251
      %v2442 = vadd.f32 %v1991, %v2254
      %v2443 = vadd.f32 %v1994, %v2257
      %v2444 = vadd.f32 %v1997, %v2260
      %v2445 = vadd.f32 %v2000, %v2263
      %v2446 = vadd.f32 %v2003, %v2266
      %v2447 = vadd.f32 %v2006, %v2269
      %v2448 = vadd.f32 %v2009, %v2272
      %v2449 = vadd.f32 %v2012, %v2275
      %v2450 = vadd.f32 %v2015, %v2278
      %v2451 = vadd.f32 %v2018, %v2281
      %v2452 = vadd.f32 %v2021, %v2284
      %v2453 = vadd.f32 %v2024, %v2287
      %v2454 = vadd.f32 %v2027, %v2290
      %v2455 = vadd.f32 %v2030, %v2293
      %v2456 = vadd.f32 %v2033, %v2296
      %v2457 = vadd.f32 %v2036, %v2299
      %v2458 = vadd.f32 %v2039, %v2302
      %v2459 = vadd.f32 %v2042, %v2305
      %v2460 = vadd.f32 %v2045, %v2308
      %v2461 = vadd.f32 %v2048, %v2311
      %v2462 = vadd.f32 %v2051, %v2314
      %v2463 = vadd.f32 %v2054, %v2317
      %v2464 = vadd.f32 %v2057, %v2320
      %v2465 = vadd.f32 %v2060, %v2323
      %v2466 = vadd.f32 %v2063, %v2326
      %v2467 = vadd.f32 %v2066, %v2329
      %v2468 = vadd.f32 %v2069, %v2332
      %v2469 = vadd.f32 %v2072, %v2335
      %v2470 = vadd.f32 %v2075, %v2338
      %v2471 = vadd.f32 %v2078, %v2341
      %v2472 = vadd.f32 %v2081, %v2344
      %v2473 = vadd.f32 %v2084, %v2347
      %v2474 = vadd.f32 %v2087, %v2350
      %v2475 = vadd.f32 %v2090, %v2353
      %v2476 = vadd.f32 %v2093, %v2356
      %v2477 = vadd.f32 %v2096, %v2359
      %v2478 = vadd.f32 %v2099, %v2362
      %v2479 = vadd.f32 %v2102, %v2365
      %v2480 = vadd.f32 %v2105, %v2368
      %v2481 = vadd.f32 %v2108, %v2371
      %v2482 = vadd.f32 %v2111, %v2374
      %v2483 = vadd.f32 %v2114, %v2377
      %v2484 = vadd.f32 %v2117, %v2380
      %v2485 = vadd.f32 %v2120, %v2383
      %v2486 = vadd.f32 %v2123, %v2386
      %v2487 = vadd.f32 %v2126, %v2389
      %v2488 = vadd.f32 %v2129, %v2392
      %v2489 = vadd.f32 %v2132, %v2395
      %v2490 = vadd.f32 %v2135, %v2398
      %v2491 = vadd.f32 %v2138, %v2401
      %v2492 = vadd.f32 %v2141, %v2404
      %v2493 = vadd.f32 %v2144, %v2407
      %v2494 = vadd.f32 %v2147, %v2410
      %v2495 = vadd.f32 %v2150, %v2413
      %v2496 = vadd.f32 %v2153, %v2416
      %v2497 = vadd.f32 %v2156, %v2419
      %v2498 = vadd.f32 %v2159, %v2422
      %v2499 = vadd.f32 %v2162, %v2425
      %v2500 = vadd.f32 %v2165, %v2428
      %v2501 = vadd.f32 %v2168, %v2431
      %v2502 = vadd.f32 %v2171, %v2434
      %v2503 = vadd.f32 %v2174, %v2437
      %v2504 = vadd.f32 %v2177, %v2440
      %v2505 = vld [vmem:[#allocation2] sm:$0x1]
      %v2507 = vlaneseq
      %v2508 = vshrl.u32 %v2507, 7
      %v2509 = vsub.s32 0, %v2508
      %v2510 = vrot.slane %v2505, %v2509
      %v2512 = vadd.f32 %v2441, %v2510
      %v2513 = vadd.f32 %v2442, %v2510
      %v2514 = vadd.f32 %v2443, %v2510
      %v2515 = vadd.f32 %v2444, %v2510
      %v2516 = vadd.f32 %v2445, %v2510
      %v2517 = vadd.f32 %v2446, %v2510
      %v2518 = vadd.f32 %v2447, %v2510
      %v2519 = vadd.f32 %v2448, %v2510
      %v2520 = vadd.f32 %v2449, %v2510
      %v2521 = vadd.f32 %v2450, %v2510
      %v2522 = vadd.f32 %v2451, %v2510
      %v2523 = vadd.f32 %v2452, %v2510
      %v2524 = vadd.f32 %v2453, %v2510
      %v2525 = vadd.f32 %v2454, %v2510
      %v2526 = vadd.f32 %v2455, %v2510
      %v2527 = vadd.f32 %v2456, %v2510
      %v2528 = vadd.f32 %v2457, %v2510
      %v2529 = vadd.f32 %v2458, %v2510
      %v2530 = vadd.f32 %v2459, %v2510
      %v2531 = vadd.f32 %v2460, %v2510
      %v2532 = vadd.f32 %v2461, %v2510
      %v2533 = vadd.f32 %v2462, %v2510
      %v2534 = vadd.f32 %v2463, %v2510
      %v2535 = vadd.f32 %v2464, %v2510
      %v2536 = vadd.f32 %v2465, %v2510
      %v2537 = vadd.f32 %v2466, %v2510
      %v2538 = vadd.f32 %v2467, %v2510
      %v2539 = vadd.f32 %v2468, %v2510
      %v2540 = vadd.f32 %v2469, %v2510
      %v2541 = vadd.f32 %v2470, %v2510
      %v2542 = vadd.f32 %v2471, %v2510
      %v2543 = vadd.f32 %v2472, %v2510
      %v2544 = vadd.f32 %v2473, %v2510
      %v2545 = vadd.f32 %v2474, %v2510
      %v2546 = vadd.f32 %v2475, %v2510
      %v2547 = vadd.f32 %v2476, %v2510
      %v2548 = vadd.f32 %v2477, %v2510
      %v2549 = vadd.f32 %v2478, %v2510
      %v2550 = vadd.f32 %v2479, %v2510
      %v2551 = vadd.f32 %v2480, %v2510
      %v2552 = vadd.f32 %v2481, %v2510
      %v2553 = vadd.f32 %v2482, %v2510
      %v2554 = vadd.f32 %v2483, %v2510
      %v2555 = vadd.f32 %v2484, %v2510
      %v2556 = vadd.f32 %v2485, %v2510
      %v2557 = vadd.f32 %v2486, %v2510
      %v2558 = vadd.f32 %v2487, %v2510
      %v2559 = vadd.f32 %v2488, %v2510
      %v2560 = vadd.f32 %v2489, %v2510
      %v2561 = vadd.f32 %v2490, %v2510
      %v2562 = vadd.f32 %v2491, %v2510
      %v2563 = vadd.f32 %v2492, %v2510
      %v2564 = vadd.f32 %v2493, %v2510
      %v2565 = vadd.f32 %v2494, %v2510
      %v2566 = vadd.f32 %v2495, %v2510
      %v2567 = vadd.f32 %v2496, %v2510
      %v2568 = vadd.f32 %v2497, %v2510
      %v2569 = vadd.f32 %v2498, %v2510
      %v2570 = vadd.f32 %v2499, %v2510
      %v2571 = vadd.f32 %v2500, %v2510
      %v2572 = vadd.f32 %v2501, %v2510
      %v2573 = vadd.f32 %v2502, %v2510
      %v2574 = vadd.f32 %v2503, %v2510
      %v2575 = vadd.f32 %v2504, %v2510
      %vm2576 = vcmask 7168
      %2577 = vst.msk [vmem:[%s309] sm:$0xff] %vm2576, %v2512
      %2578 = vst.msk [vmem:[%s309 + $0x8] sm:$0xff] %vm2576, %v2513
      %2579 = vst.msk [vmem:[%s309 + $0x10] sm:$0xff] %vm2576, %v2514
      %2580 = vst.msk [vmem:[%s309 + $0x18] sm:$0xff] %vm2576, %v2515
      %2581 = vst.msk [vmem:[%s309 + $0x20] sm:$0xff] %vm2576, %v2516
      %2582 = vst.msk [vmem:[%s309 + $0x28] sm:$0xff] %vm2576, %v2517
      %2583 = vst.msk [vmem:[%s309 + $0x30] sm:$0xff] %vm2576, %v2518
      %2584 = vst.msk [vmem:[%s309 + $0x38] sm:$0xff] %vm2576, %v2519
      %2585 = vst.msk [vmem:[%s309 + $0x40] sm:$0xff] %vm2576, %v2520
      %2586 = vst.msk [vmem:[%s309 + $0x48] sm:$0xff] %vm2576, %v2521
      %2587 = vst.msk [vmem:[%s309 + $0x50] sm:$0xff] %vm2576, %v2522
      %2588 = vst.msk [vmem:[%s309 + $0x58] sm:$0xff] %vm2576, %v2523
      %2589 = vst.msk [vmem:[%s309 + $0x60] sm:$0xff] %vm2576, %v2524
      %2590 = vst.msk [vmem:[%s309 + $0x68] sm:$0xff] %vm2576, %v2525
      %2591 = vst.msk [vmem:[%s309 + $0x70] sm:$0xff] %vm2576, %v2526
      %2592 = vst.msk [vmem:[%s309 + $0x78] sm:$0xff] %vm2576, %v2527
      %2593 = vst.msk [vmem:[%s309 + $0x80] sm:$0xff] %vm2576, %v2528
      %2594 = vst.msk [vmem:[%s309 + $0x88] sm:$0xff] %vm2576, %v2529
      %2595 = vst.msk [vmem:[%s309 + $0x90] sm:$0xff] %vm2576, %v2530
      %2596 = vst.msk [vmem:[%s309 + $0x98] sm:$0xff] %vm2576, %v2531
      %2597 = vst.msk [vmem:[%s309 + $0xa0] sm:$0xff] %vm2576, %v2532
      %2598 = vst.msk [vmem:[%s309 + $0xa8] sm:$0xff] %vm2576, %v2533
      %2599 = vst.msk [vmem:[%s309 + $0xb0] sm:$0xff] %vm2576, %v2534
      %2600 = vst.msk [vmem:[%s309 + $0xb8] sm:$0xff] %vm2576, %v2535
      %2601 = vst.msk [vmem:[%s309 + $0xc0] sm:$0xff] %vm2576, %v2536
      %2602 = vst.msk [vmem:[%s309 + $0xc8] sm:$0xff] %vm2576, %v2537
      %2603 = vst.msk [vmem:[%s309 + $0xd0] sm:$0xff] %vm2576, %v2538
      %2604 = vst.msk [vmem:[%s309 + $0xd8] sm:$0xff] %vm2576, %v2539
      %2605 = vst.msk [vmem:[%s309 + $0xe0] sm:$0xff] %vm2576, %v2540
      %2606 = vst.msk [vmem:[%s309 + $0xe8] sm:$0xff] %vm2576, %v2541
      %2607 = vst.msk [vmem:[%s309 + $0xf0] sm:$0xff] %vm2576, %v2542
      %2608 = vst.msk [vmem:[%s309 + $0xf8] sm:$0xff] %vm2576, %v2543
      %2609 = vst.msk [vmem:[%s309 + $0x100] sm:$0xff] %vm2576, %v2544
      %2610 = vst.msk [vmem:[%s309 + $0x108] sm:$0xff] %vm2576, %v2545
      %2611 = vst.msk [vmem:[%s309 + $0x110] sm:$0xff] %vm2576, %v2546
      %2612 = vst.msk [vmem:[%s309 + $0x118] sm:$0xff] %vm2576, %v2547
      %2613 = vst.msk [vmem:[%s309 + $0x120] sm:$0xff] %vm2576, %v2548
      %2614 = vst.msk [vmem:[%s309 + $0x128] sm:$0xff] %vm2576, %v2549
      %2615 = vst.msk [vmem:[%s309 + $0x130] sm:$0xff] %vm2576, %v2550
      %2616 = vst.msk [vmem:[%s309 + $0x138] sm:$0xff] %vm2576, %v2551
      %2617 = vst.msk [vmem:[%s309 + $0x140] sm:$0xff] %vm2576, %v2552
      %2618 = vst.msk [vmem:[%s309 + $0x148] sm:$0xff] %vm2576, %v2553
      %2619 = vst.msk [vmem:[%s309 + $0x150] sm:$0xff] %vm2576, %v2554
      %2620 = vst.msk [vmem:[%s309 + $0x158] sm:$0xff] %vm2576, %v2555
      %2621 = vst.msk [vmem:[%s309 + $0x160] sm:$0xff] %vm2576, %v2556
      %2622 = vst.msk [vmem:[%s309 + $0x168] sm:$0xff] %vm2576, %v2557
      %2623 = vst.msk [vmem:[%s309 + $0x170] sm:$0xff] %vm2576, %v2558
      %2624 = vst.msk [vmem:[%s309 + $0x178] sm:$0xff] %vm2576, %v2559
      %2625 = vst.msk [vmem:[%s309 + $0x180] sm:$0xff] %vm2576, %v2560
      %2626 = vst.msk [vmem:[%s309 + $0x188] sm:$0xff] %vm2576, %v2561
      %2627 = vst.msk [vmem:[%s309 + $0x190] sm:$0xff] %vm2576, %v2562
      %2628 = vst.msk [vmem:[%s309 + $0x198] sm:$0xff] %vm2576, %v2563
      %2629 = vst.msk [vmem:[%s309 + $0x1a0] sm:$0xff] %vm2576, %v2564
      %2630 = vst.msk [vmem:[%s309 + $0x1a8] sm:$0xff] %vm2576, %v2565
      %2631 = vst.msk [vmem:[%s309 + $0x1b0] sm:$0xff] %vm2576, %v2566
      %2632 = vst.msk [vmem:[%s309 + $0x1b8] sm:$0xff] %vm2576, %v2567
      %2633 = vst.msk [vmem:[%s309 + $0x1c0] sm:$0xff] %vm2576, %v2568
      %2634 = vst.msk [vmem:[%s309 + $0x1c8] sm:$0xff] %vm2576, %v2569
      %2635 = vst.msk [vmem:[%s309 + $0x1d0] sm:$0xff] %vm2576, %v2570
      %2636 = vst.msk [vmem:[%s309 + $0x1d8] sm:$0xff] %vm2576, %v2571
      %2637 = vst.msk [vmem:[%s309 + $0x1e0] sm:$0xff] %vm2576, %v2572
      %2638 = vst.msk [vmem:[%s309 + $0x1e8] sm:$0xff] %vm2576, %v2573
      %2639 = vst.msk [vmem:[%s309 + $0x1f0] sm:$0xff] %vm2576, %v2574
      %2640 = vst.msk [vmem:[%s309 + $0x1f8] sm:$0xff] %vm2576, %v2575
      %s2641 = smul.u32 64, %s21
      %p2642 = scmp.lt.s32.totalorder %s2641, 127
      %s2643 = scalar_select %p2642, %s2641, 127
      %s2644 = smul.addr %s2643, 8
      %s2645 = scalar_lea.vmem %s8, %s2644
      // Predicated region
      $region53: #{tpu_custom_call.1} parent=51 // pred_check
        %p2646 = pneg %p212
      $region54: #{tpu_custom_call.1} parent=51 // pred_check_branch
        %2648 = sbr.rel (%p2646) target = $region56
      $region55: #{tpu_custom_call.1} parent=51 // pred_region
        %s2649 = smul.u32 64, %s21
      $region56: #{tpu_custom_call.1} parent=51 // pred_fallthru
        _
    $region52: #{tpu_custom_call.1} parent=5 // pred_fallthru
      _
    %p2650 = scmp.le.s32.totalorder 2, %s16
    // Predicated region
    $region57: #{tpu_custom_call.1} parent=5 // pred_check
      %p2651 = pneg %p2650
    $region58: #{tpu_custom_call.1} parent=5 // pred_check_branch
      %2653 = sbr.rel (%p2651) target = $region60
    $region59: #{tpu_custom_call.1} parent=5 // pred_region
      %s2654 = ssub.s32 %s16, 2
      // Predicated region
      $region61: #{tpu_custom_call.1} parent=59 // pred_check
        %p2655 = pneg %p218
      $region62: #{tpu_custom_call.1} parent=59 // pred_check_branch
        %2657 = sbr.rel (%p2655) target = $region64
      $region63: #{tpu_custom_call.1} parent=59 // pred_region
        %s2658 = smul.u32 64, %s22
        %p2659 = scmp.lt.s32.totalorder %s2658, 127
        %s2660 = scalar_select %p2659, %s2658, 127
        %s2661 = smul.addr %s2660, 8
        %s2662 = scalar_lea.vmem %s8, %s2661
      $region64: #{tpu_custom_call.1} parent=59 // pred_fallthru
        _
    $region60: #{tpu_custom_call.1} parent=5 // pred_fallthru
      _
  $region6: #{tpu_custom_call.1} parent=0 // loop_footer
    %s20 = sadd.s32 1, %s16
  $region7: #{tpu_custom_call.1} parent=0 // loop_footer_branch
    %15 = sbr.rel target = $region3
  $region8: #{tpu_custom_call.1} parent=0 // loop_exit
    _

</llo_original>
